<compile_context>
chip_gen: v7x
topology: tpu7x:2x2x1
jax: 0.10.0
libtpu: 0.0.40
codegen_flags: <defaults>
</compile_context>

<pallas_src>
import functools

import jax
import jax.numpy as jnp
from jax.experimental import pallas as pl
from jax.experimental.pallas import tpu as pltpu


# ---------------- model config (small, consistent with ModelArgs fields used) --
HIDDEN_SIZE = 32
NUM_HEADS = 4
HEAD_DIM = 8           # num_heads * head_dim == hidden_size
RMS_EPS = 1e-6
BATCH = 2
SEQ = 8


def transformer_block_kernel(x_ref, wqkv_ref, wo_ref, w1_ref, w2_ref,
                             attn_nw_ref, mlp_nw_ref, o_ref,
                             *, bb, num_heads, head_dim, seq, eps):
    """One grid step processes a batch-block of `bb` sequences.

    x_ref:       (bb*L, D)
    wqkv_ref:    (bb*H, D, 3*hd)   fused per-(batch,head) QKV weights, scale in Wq
    wo_ref:      (bb*H, hd, D)     per-(batch,head) output-projection weights
    w1_ref:      (D, 4*D), w2_ref: (4*D, D)
    attn_nw_ref, mlp_nw_ref: (1, D)
    """
    H, hd, L = num_heads, head_dim, seq
    D = x_ref.shape[-1]
    G = bb * H

    x = x_ref[...]                                           # (bb*L, D) f32

    # ---- attention RMSNorm -------------------------------------------------
    ms = jnp.mean(x * x, axis=-1, keepdims=True)
    xn = x * jax.lax.rsqrt(ms + eps) * attn_nw_ref[...]      # (bb*L, D)

    # ---- fused QKV projection, batched over (batch, head) groups -----------
    # Activations replicated per head (leading-dim broadcast only; tile-aligned
    # reshapes, no lane/sublane relayout). One batched dot instead of 3.
    xn_g = jnp.broadcast_to(xn.reshape(bb, 1, L, D), (bb, H, L, D)).reshape(G, L, D)
    qkv = jnp.einsum("gld,gde->gle", xn_g, wqkv_ref[...],
                     preferred_element_type=jnp.float32)     # (G, L, 3*hd)
    q = qkv[..., :hd]                                        # static lane slices
    k = qkv[..., hd:2 * hd]
    v = qkv[..., 2 * hd:]

    # ---- scaled dot-product attention (scale pre-folded into Wq) -----------
    s = jnp.einsum("gld,gmd->glm", q, k,
                   preferred_element_type=jnp.float32)       # (G, L, L)
    s = s - jnp.max(s, axis=-1, keepdims=True)
    p = jnp.exp(s)
    p = p * pl.reciprocal(jnp.sum(p, axis=-1, keepdims=True), approx=True)
    a = jnp.einsum("glm,gmd->gld", p, v,
                   preferred_element_type=jnp.float32)       # (G, L, hd)

    # ---- output projection per head, summed over heads (no concat) ---------
    o_heads = jnp.einsum("gld,gde->gle", a, wo_ref[...],
                         preferred_element_type=jnp.float32)  # (G, L, D)
    attn_out = jnp.sum(o_heads.reshape(bb, H, L, D), axis=1).reshape(bb * L, D)
    x = x + attn_out

    # ---- MLP RMSNorm --------------------------------------------------------
    ms2 = jnp.mean(x * x, axis=-1, keepdims=True)
    xn2 = x * jax.lax.rsqrt(ms2 + eps) * mlp_nw_ref[...]

    # ---- SiLU MLP + residual ------------------------------------------------
    # (bb*L, D) @ (D, 4D) -> (bb*L, 4D): 4D = 128 lanes, fully lane-dense.
    # TODO(synk): at realistic sizes cast matmul inputs to bf16 (f32 accum) on
    # v6e/v7x and tile w1/w2; irrelevant at this toy size.
    h1 = jnp.dot(xn2, w1_ref[...], preferred_element_type=jnp.float32)
    h1 = h1 * jax.nn.sigmoid(h1)                             # SiLU
    x = x + jnp.dot(h1, w2_ref[...], preferred_element_type=jnp.float32)

    o_ref[...] = x


def transformer_block(x, params, *, num_heads=NUM_HEADS, head_dim=HEAD_DIM,
                      eps=RMS_EPS):
    """x: (B, L, D) float32.  params: dict of pre-transposed ([in, out]) weights."""
    B, L, D = x.shape
    H, hd = num_heads, head_dim
    HD = H * hd
    assert HD == D

    # Batch block per grid step: collapse the grid on single-TensorCore chips
    # (v5e/v6e) to avoid per-step overhead; keep batch-parallel grid on v7x so
    # both TensorCores are used.
    kind = jax.devices()[0].device_kind.lower()
    two_core = ("v7" in kind) or ("tpu7" in kind)
    bb = max(1, B // 2) if (two_core and B % 2 == 0) else B
    grid = (B // bb,)
    G = bb * H

    # ---- wrapper-side weight prep (done once per call, outside the kernel) --
    scale = hd ** (-0.5)
    wq_h = (params["wq"] * scale).reshape(D, H, hd).transpose(1, 0, 2)   # (H, D, hd)
    wk_h = params["wk"].reshape(D, H, hd).transpose(1, 0, 2)
    wv_h = params["wv"].reshape(D, H, hd).transpose(1, 0, 2)
    wqkv_h = jnp.concatenate([wq_h, wk_h, wv_h], axis=-1)                # (H, D, 3*hd)
    wqkv_g = jnp.tile(wqkv_h, (bb, 1, 1))                                # (G, D, 3*hd)
    wo_g = jnp.tile(params["wo"].reshape(H, hd, D), (bb, 1, 1))          # (G, hd, D)

    x2 = x.reshape(B * L, D)   # contiguous 2-D activations (single-tile stores)
    # TODO(synk): D=32 < 128 lanes, so stores stay lane-masked; a fully
    # lane-dense (B*L*D/128, 128) output slab would need an in-kernel relayout
    # that costs more than it saves at this size.

    kernel = functools.partial(transformer_block_kernel,
                               bb=bb, num_heads=H, head_dim=hd, seq=L, eps=eps)

    out2 = pl.pallas_call(
        kernel,
        out_shape=jax.ShapeDtypeStruct((B * L, D), jnp.float32),
        grid=grid,
        in_specs=[
            pl.BlockSpec((bb * L, D), lambda i: (i, 0)),        # x
            pl.BlockSpec((G, D, 3 * hd), lambda i: (0, 0, 0)),  # fused QKV (grouped)
            pl.BlockSpec((G, hd, D), lambda i: (0, 0, 0)),      # Wo (grouped)
            pl.BlockSpec((D, 4 * D), lambda i: (0, 0)),         # W1^T
            pl.BlockSpec((4 * D, D), lambda i: (0, 0)),         # W2^T
            pl.BlockSpec((1, D), lambda i: (0, 0)),             # attn norm weight
            pl.BlockSpec((1, D), lambda i: (0, 0)),             # mlp norm weight
        ],
        out_specs=pl.BlockSpec((bb * L, D), lambda i: (i, 0)),
        compiler_params=pltpu.CompilerParams(
            dimension_semantics=("parallel",)),
    )(x2, wqkv_g, wo_g, params["w1"], params["w2"],
      params["attn_norm_w"], params["mlp_norm_w"])

    return out2.reshape(B, L, D)


def init_params(key, hidden=HIDDEN_SIZE, num_heads=NUM_HEADS, head_dim=HEAD_DIM):
    HD = num_heads * head_dim
    ks = jax.random.split(key, 6)
    scale = 0.02
    # stored pre-transposed: (in_features, out_features), i.e. PyTorch W^T
    return {
        "wq": scale * jax.random.normal(ks[0], (hidden, HD), jnp.float32),
        "wk": scale * jax.random.normal(ks[1], (hidden, HD), jnp.float32),
        "wv": scale * jax.random.normal(ks[2], (hidden, HD), jnp.float32),
        "wo": scale * jax.random.normal(ks[3], (HD, hidden), jnp.float32),
        "w1": scale * jax.random.normal(ks[4], (hidden, 4 * hidden), jnp.float32),
        "w2": scale * jax.random.normal(ks[5], (4 * hidden, hidden), jnp.float32),
        "attn_norm_w": jnp.ones((1, hidden), jnp.float32),   # RMSNorm init = ones
        "mlp_norm_w": jnp.ones((1, hidden), jnp.float32),
    }


def transformer_block_ref(x, params, *, num_heads=NUM_HEADS, head_dim=HEAD_DIM,
                          eps=RMS_EPS):
    """Pure-JAX reference for a sanity check."""
    def rmsnorm(h, w):
        ms = jnp.mean(h * h, axis=-1, keepdims=True)
        return h * jax.lax.rsqrt(ms + eps) * w[0]

    B, L, D = x.shape
    xn = rmsnorm(x, params["attn_norm_w"])
    q = xn @ params["wq"]
    k = xn @ params["wk"]
    v = xn @ params["wv"]
    q = q.reshape(B, L, num_heads, head_dim).transpose(0, 2, 1, 3)
    k = k.reshape(B, L, num_heads, head_dim).transpose(0, 2, 1, 3)
    v = v.reshape(B, L, num_heads, head_dim).transpose(0, 2, 1, 3)
    s = jnp.einsum("bhqd,bhkd->bhqk", q, k) * head_dim ** (-0.5)
    p = jax.nn.softmax(s, axis=-1)
    a = jnp.einsum("bhqk,bhkd->bhqd", p, v).transpose(0, 2, 1, 3).reshape(B, L, -1)
    x = x + a @ params["wo"]
    xn2 = rmsnorm(x, params["mlp_norm_w"])
    h1 = xn2 @ params["w1"]
    h1 = h1 * jax.nn.sigmoid(h1)
    return x + h1 @ params["w2"]


if __name__ == "__main__":
    key = jax.random.PRNGKey(0)
    kx, kp = jax.random.split(key)
    x = jax.random.normal(kx, (BATCH, SEQ, HIDDEN_SIZE), jnp.float32)
    params = init_params(kp)

    # TODO(synk): optional attn_mask argument of SDPA not plumbed (forward is
    # exercised with mask=None, dropout in eval mode is identity).
    out = transformer_block(x, params)
    out = jax.block_until_ready(out)

    ref = transformer_block_ref(x, params)
    assert out.shape == (BATCH, SEQ, HIDDEN_SIZE)
    # tolerance loosened slightly vs 1e-4: softmax denom uses the EUP
    # approximate reciprocal (pl.reciprocal(approx=True)).
    assert jnp.allclose(out, ref, atol=2e-3, rtol=2e-3)

    print("KERNEL_OK")
</pallas_src>

<mosaic_0001>
module attributes {stable_mosaic.version = 11 : i64} {
  func.func @transformer_block_kernel(%arg0: i32, %arg1: memref<16x32xf32, #tpu.memory_space<vmem>>, %arg2: memref<8x32x24xf32, #tpu.memory_space<vmem>>, %arg3: memref<8x8x32xf32, #tpu.memory_space<vmem>>, %arg4: memref<32x128xf32, #tpu.memory_space<vmem>>, %arg5: memref<128x32xf32, #tpu.memory_space<vmem>>, %arg6: memref<1x32xf32, #tpu.memory_space<vmem>>, %arg7: memref<1x32xf32, #tpu.memory_space<vmem>>, %arg8: memref<16x32xf32, #tpu.memory_space<vmem>>) attributes {dimension_semantics = [#tpu.dimension_semantics<parallel>], iteration_bounds = array<i64: 1>, scalar_prefetch = 0 : i64, scratch_operands = 0 : i64, tpu.core_type = #tpu.core_type<tc>, window_params = [{transform_indices = @transform_0, window_bounds = array<i64: 16, 32>}, {pipeline_mode = #tpu.pipeline_mode<synchronous>, transform_indices = @transform_1, window_bounds = array<i64: 8, 32, 24>}, {pipeline_mode = #tpu.pipeline_mode<synchronous>, transform_indices = @transform_2, window_bounds = array<i64: 8, 8, 32>}, {pipeline_mode = #tpu.pipeline_mode<synchronous>, transform_indices = @transform_3, window_bounds = array<i64: 32, 128>}, {pipeline_mode = #tpu.pipeline_mode<synchronous>, transform_indices = @transform_4, window_bounds = array<i64: 128, 32>}, {pipeline_mode = #tpu.pipeline_mode<synchronous>, transform_indices = @transform_5, window_bounds = array<i64: 1, 32>}, {pipeline_mode = #tpu.pipeline_mode<synchronous>, transform_indices = @transform_6, window_bounds = array<i64: 1, 32>}, {transform_indices = @transform_7, window_bounds = array<i64: 16, 32>}]} {
    %c0 = arith.constant 0 : index
    %c0_0 = arith.constant 0 : index
    %0 = vector.load %arg1[%c0, %c0_0] : memref<16x32xf32, #tpu.memory_space<vmem>>, vector<16x32xf32>
    %1 = arith.mulf %0, %0 : vector<16x32xf32>
    %cst = arith.constant dense<0.000000e+00> : vector<16xf32>
    %2 = vector.multi_reduction <add>, %1, %cst [1] : vector<16x32xf32> to vector<16xf32>
    %3 = vector.shape_cast %2 : vector<16xf32> to vector<16x1xf32>
    %cst_1 = arith.constant 3.200000e+01 : f32
    %4 = vector.broadcast %cst_1 : f32 to vector<16x1xf32>
    %5 = arith.divf %3, %4 : vector<16x1xf32>
    %cst_2 = arith.constant 9.99999997E-7 : f32
    %6 = vector.broadcast %cst_2 : f32 to vector<16x1xf32>
    %7 = arith.addf %5, %6 : vector<16x1xf32>
    %8 = math.rsqrt %7 : vector<16x1xf32>
    %9 = vector.broadcast %8 : vector<16x1xf32> to vector<16x32xf32>
    %10 = arith.mulf %0, %9 : vector<16x32xf32>
    %c0_3 = arith.constant 0 : index
    %c0_4 = arith.constant 0 : index
    %11 = vector.load %arg6[%c0_3, %c0_4] : memref<1x32xf32, #tpu.memory_space<vmem>>, vector<1x32xf32>
    %12 = vector.broadcast %11 : vector<1x32xf32> to vector<16x32xf32>
    %13 = arith.mulf %10, %12 : vector<16x32xf32>
    %14 = vector.shape_cast %13 : vector<16x32xf32> to vector<2x1x8x32xf32>
    %15 = vector.shape_cast %14 : vector<2x1x8x32xf32> to vector<2x1x8x32xf32>
    %16 = vector.broadcast %15 : vector<2x1x8x32xf32> to vector<2x4x8x32xf32>
    %17 = vector.shape_cast %16 : vector<2x4x8x32xf32> to vector<8x8x32xf32>
    %c0_5 = arith.constant 0 : index
    %c0_6 = arith.constant 0 : index
    %c0_7 = arith.constant 0 : index
    %18 = vector.load %arg2[%c0_5, %c0_6, %c0_7] : memref<8x32x24xf32, #tpu.memory_space<vmem>>, vector<8x32x24xf32>
    "tpu.trace_start"() <{level = 10 : i32, message = "gld,gde->gle"}> : () -> ()
    %cst_8 = arith.constant dense<0.000000e+00> : vector<8x8x24xf32>
    %19 = tpu.matmul %17, %18, %cst_8 {dimension_numbers = #tpu.dot_dimension_numbers<[2], [1], [1], [2], [0, 0, 0, 1, 1, 2], [0], [0]>} : vector<8x8x32xf32>, vector<8x32x24xf32>, vector<8x8x24xf32> -> vector<8x8x24xf32>
    "tpu.trace_stop"() : () -> ()
    %20 = vector.extract_strided_slice %19 {offsets = [0, 0, 0], sizes = [8, 8, 8], strides = [1, 1, 1]} : vector<8x8x24xf32> to vector<8x8x8xf32>
    %21 = vector.extract_strided_slice %19 {offsets = [0, 0, 8], sizes = [8, 8, 8], strides = [1, 1, 1]} : vector<8x8x24xf32> to vector<8x8x8xf32>
    %22 = vector.extract_strided_slice %19 {offsets = [0, 0, 16], sizes = [8, 8, 8], strides = [1, 1, 1]} : vector<8x8x24xf32> to vector<8x8x8xf32>
    "tpu.trace_start"() <{level = 10 : i32, message = "gld,gmd->glm"}> : () -> ()
    %cst_9 = arith.constant dense<0.000000e+00> : vector<8x8x8xf32>
    %23 = tpu.matmul %20, %21, %cst_9 {dimension_numbers = #tpu.dot_dimension_numbers<[2], [2], [1], [1], [0, 0, 0, 1, 1, 1], [0], [0]>} : vector<8x8x8xf32>, vector<8x8x8xf32>, vector<8x8x8xf32> -> vector<8x8x8xf32>
    "tpu.trace_stop"() : () -> ()
    %cst_10 = arith.constant dense<0xFF800000> : vector<8x8xf32>
    %24 = vector.multi_reduction <maximumf>, %23, %cst_10 [2] : vector<8x8x8xf32> to vector<8x8xf32>
    %25 = vector.shape_cast %24 : vector<8x8xf32> to vector<8x8x1xf32>
    %26 = vector.broadcast %25 : vector<8x8x1xf32> to vector<8x8x8xf32>
    %27 = arith.subf %23, %26 : vector<8x8x8xf32>
    %28 = math.exp %27 : vector<8x8x8xf32>
    %cst_11 = arith.constant dense<0.000000e+00> : vector<8x8xf32>
    %29 = vector.multi_reduction <add>, %28, %cst_11 [2] : vector<8x8x8xf32> to vector<8x8xf32>
    %30 = vector.shape_cast %29 : vector<8x8xf32> to vector<8x8x1xf32>
    %31 = tpu.reciprocal %30 {approx = true} : vector<8x8x1xf32> -> vector<8x8x1xf32>
    %32 = vector.broadcast %31 : vector<8x8x1xf32> to vector<8x8x8xf32>
    %33 = arith.mulf %28, %32 : vector<8x8x8xf32>
    "tpu.trace_start"() <{level = 10 : i32, message = "glm,gmd->gld"}> : () -> ()
    %cst_12 = arith.constant dense<0.000000e+00> : vector<8x8x8xf32>
    %34 = tpu.matmul %33, %22, %cst_12 {dimension_numbers = #tpu.dot_dimension_numbers<[2], [1], [1], [2], [0, 0, 0, 1, 1, 2], [0], [0]>} : vector<8x8x8xf32>, vector<8x8x8xf32>, vector<8x8x8xf32> -> vector<8x8x8xf32>
    "tpu.trace_stop"() : () -> ()
    %c0_13 = arith.constant 0 : index
    %c0_14 = arith.constant 0 : index
    %c0_15 = arith.constant 0 : index
    %35 = vector.load %arg3[%c0_13, %c0_14, %c0_15] : memref<8x8x32xf32, #tpu.memory_space<vmem>>, vector<8x8x32xf32>
    "tpu.trace_start"() <{level = 10 : i32, message = "gld,gde->gle"}> : () -> ()
    %cst_16 = arith.constant dense<0.000000e+00> : vector<8x8x32xf32>
    %36 = tpu.matmul %34, %35, %cst_16 {dimension_numbers = #tpu.dot_dimension_numbers<[2], [1], [1], [2], [0, 0, 0, 1, 1, 2], [0], [0]>} : vector<8x8x8xf32>, vector<8x8x32xf32>, vector<8x8x32xf32> -> vector<8x8x32xf32>
    "tpu.trace_stop"() : () -> ()
    %37 = vector.shape_cast %36 : vector<8x8x32xf32> to vector<2x4x8x32xf32>
    %cst_17 = arith.constant dense<0.000000e+00> : vector<2x8x32xf32>
    %38 = vector.multi_reduction <add>, %37, %cst_17 [1] : vector<2x4x8x32xf32> to vector<2x8x32xf32>
    %39 = vector.shape_cast %38 : vector<2x8x32xf32> to vector<16x32xf32>
    %40 = arith.addf %0, %39 : vector<16x32xf32>
    %41 = arith.mulf %40, %40 : vector<16x32xf32>
    %cst_18 = arith.constant dense<0.000000e+00> : vector<16xf32>
    %42 = vector.multi_reduction <add>, %41, %cst_18 [1] : vector<16x32xf32> to vector<16xf32>
    %43 = vector.shape_cast %42 : vector<16xf32> to vector<16x1xf32>
    %cst_19 = arith.constant 3.200000e+01 : f32
    %44 = vector.broadcast %cst_19 : f32 to vector<16x1xf32>
    %45 = arith.divf %43, %44 : vector<16x1xf32>
    %cst_20 = arith.constant 9.99999997E-7 : f32
    %46 = vector.broadcast %cst_20 : f32 to vector<16x1xf32>
    %47 = arith.addf %45, %46 : vector<16x1xf32>
    %48 = math.rsqrt %47 : vector<16x1xf32>
    %49 = vector.broadcast %48 : vector<16x1xf32> to vector<16x32xf32>
    %50 = arith.mulf %40, %49 : vector<16x32xf32>
    %c0_21 = arith.constant 0 : index
    %c0_22 = arith.constant 0 : index
    %51 = vector.load %arg7[%c0_21, %c0_22] : memref<1x32xf32, #tpu.memory_space<vmem>>, vector<1x32xf32>
    %52 = vector.broadcast %51 : vector<1x32xf32> to vector<16x32xf32>
    %53 = arith.mulf %50, %52 : vector<16x32xf32>
    %c0_23 = arith.constant 0 : index
    %c0_24 = arith.constant 0 : index
    %54 = vector.load %arg4[%c0_23, %c0_24] : memref<32x128xf32, #tpu.memory_space<vmem>>, vector<32x128xf32>
    %cst_25 = arith.constant dense<0.000000e+00> : vector<16x128xf32>
    %55 = tpu.matmul %53, %54, %cst_25 {dimension_numbers = #tpu.dot_dimension_numbers<[1], [0], [0], [1], [0, 0, 1, 1], [], []>} : vector<16x32xf32>, vector<32x128xf32>, vector<16x128xf32> -> vector<16x128xf32>
    %56 = arith.negf %55 : vector<16x128xf32>
    %57 = math.exp %56 : vector<16x128xf32>
    %cst_26 = arith.constant 1.000000e+00 : f32
    %58 = vector.broadcast %cst_26 : f32 to vector<16x128xf32>
    %59 = arith.addf %58, %57 : vector<16x128xf32>
    %60 = arith.divf %58, %59 : vector<16x128xf32>
    %61 = arith.mulf %55, %60 : vector<16x128xf32>
    %c0_27 = arith.constant 0 : index
    %c0_28 = arith.constant 0 : index
    %62 = vector.load %arg5[%c0_27, %c0_28] : memref<128x32xf32, #tpu.memory_space<vmem>>, vector<128x32xf32>
    %cst_29 = arith.constant dense<0.000000e+00> : vector<16x32xf32>
    %63 = tpu.matmul %61, %62, %cst_29 {dimension_numbers = #tpu.dot_dimension_numbers<[1], [0], [0], [1], [0, 0, 1, 1], [], []>} : vector<16x128xf32>, vector<128x32xf32>, vector<16x32xf32> -> vector<16x32xf32>
    %64 = arith.addf %40, %63 : vector<16x32xf32>
    %c0_30 = arith.constant 0 : index
    %c0_31 = arith.constant 0 : index
    %65 = vector.load %arg8[%c0_30, %c0_31] : memref<16x32xf32, #tpu.memory_space<vmem>>, vector<16x32xf32>
    tpu.vector_store %arg8[%c0_30, %c0_31], %64 {strides = array<i32>} : memref<16x32xf32, #tpu.memory_space<vmem>>, vector<16x32xf32>,
    return
  }
  func.func @transform_0(%arg0: i32) -> (i32, i32) {
    %c0_i32 = arith.constant 0 : i32
    %c0_i32_0 = arith.constant 0 : i32
    return %arg0, %c0_i32 : i32, i32
  }
  func.func @transform_1(%arg0: i32) -> (i32, i32, i32) {
    %c0_i32 = arith.constant 0 : i32
    %c0_i32_0 = arith.constant 0 : i32
    %c0_i32_1 = arith.constant 0 : i32
    %c0_i32_2 = arith.constant 0 : i32
    return %c0_i32, %c0_i32_0, %c0_i32_1 : i32, i32, i32
  }
  func.func @transform_2(%arg0: i32) -> (i32, i32, i32) {
    %c0_i32 = arith.constant 0 : i32
    %c0_i32_0 = arith.constant 0 : i32
    %c0_i32_1 = arith.constant 0 : i32
    %c0_i32_2 = arith.constant 0 : i32
    return %c0_i32, %c0_i32_0, %c0_i32_1 : i32, i32, i32
  }
  func.func @transform_3(%arg0: i32) -> (i32, i32) {
    %c0_i32 = arith.constant 0 : i32
    %c0_i32_0 = arith.constant 0 : i32
    %c0_i32_1 = arith.constant 0 : i32
    return %c0_i32, %c0_i32_0 : i32, i32
  }
  func.func @transform_4(%arg0: i32) -> (i32, i32) {
    %c0_i32 = arith.constant 0 : i32
    %c0_i32_0 = arith.constant 0 : i32
    %c0_i32_1 = arith.constant 0 : i32
    return %c0_i32, %c0_i32_0 : i32, i32
  }
  func.func @transform_5(%arg0: i32) -> (i32, i32) {
    %c0_i32 = arith.constant 0 : i32
    %c0_i32_0 = arith.constant 0 : i32
    %c0_i32_1 = arith.constant 0 : i32
    return %c0_i32, %c0_i32_0 : i32, i32
  }
  func.func @transform_6(%arg0: i32) -> (i32, i32) {
    %c0_i32 = arith.constant 0 : i32
    %c0_i32_0 = arith.constant 0 : i32
    %c0_i32_1 = arith.constant 0 : i32
    return %c0_i32, %c0_i32_0 : i32, i32
  }
  func.func @transform_7(%arg0: i32) -> (i32, i32) {
    %c0_i32 = arith.constant 0 : i32
    %c0_i32_0 = arith.constant 0 : i32
    return %arg0, %c0_i32 : i32, i32
  }
}

</mosaic_0001>

<llo_original>
// kernel: tpu_custom_call.1
$region0: #{tpu_custom_call.1}
  #allocation0 [shape = 'u32[]', space=smem, size = 0x4, offset = 0x4, fixed_abs, tag = 'smem constant byte address 0x4 - core index']
  #allocation1 [shape = 'u32[144,128]{1,0:T(1,128)}', space=vmem, size = 0x12000, scoped, tag = 'internal scratch']
  %s0 = inlined_call_operand.vmem [shape: f32[16,32], index: 0, kind: input, shape index: {}]
  %s1 = inlined_call_operand.vmem [shape: f32[8,32,24], index: 1, kind: input, shape index: {}]
  %s2 = inlined_call_operand.vmem [shape: f32[8,8,32], index: 2, kind: input, shape index: {}]
  %s3 = inlined_call_operand.vmem [shape: f32[32,128], index: 3, kind: input, shape index: {}]
  %s4 = inlined_call_operand.vmem [shape: f32[128,32], index: 4, kind: input, shape index: {}]
  %s5 = inlined_call_operand.vmem [shape: f32[1,32], index: 5, kind: input, shape index: {}]
  %s6 = inlined_call_operand.vmem [shape: f32[1,32], index: 6, kind: input, shape index: {}]
  %s7 = inlined_call_operand.hbm [shape: f32[16,32], index: 7, kind: output, shape index: {}]
  %s8 = sld [smem:[#allocation0]]
  $region38: #{tpu_custom_call.1} parent=0
    _
  %s10 = ssub.s32 1, %s8
  %s11 = scalar_select 0, %s10, %s8
  $region1: #{tpu_custom_call.1} parent=0
    #allocation2 [shape = 'u8[8192]{0}', space=vmem, size = 0x2000, scoped, tag = 'output window, operand 0, single buffered']
    #allocation3 [shape = 's32[1]{0}', space=sflag, size = 0x4, scoped, tag = 'scoped memory for tpu_custom_call.1']
    %12 = vsyncpa [#allocation3], 0
    // Predicated region
    $region2: #{tpu_custom_call.1} parent=1 // pred_check
      _
    $region3: #{tpu_custom_call.1} parent=1 // pred_check_branch
      %14 = sbr.rel (0) target = $region5
    $region4: #{tpu_custom_call.1} parent=1 // pred_region
      _
    $region5: #{tpu_custom_call.1} parent=1 // pred_fallthru
      _
    // Predicated region
    $region6: #{tpu_custom_call.1} parent=1 // pred_check
      _
    $region7: #{tpu_custom_call.1} parent=1 // pred_check_branch
      %16 = sbr.rel (0) target = $region9
    $region8: #{tpu_custom_call.1} parent=1 // pred_region
      _
    $region9: #{tpu_custom_call.1} parent=1 // pred_fallthru
      _
    // Predicated region
    $region10: #{tpu_custom_call.1} parent=1 // pred_check
      _
    $region11: #{tpu_custom_call.1} parent=1 // pred_check_branch
      %18 = sbr.rel (0) target = $region13
    $region12: #{tpu_custom_call.1} parent=1 // pred_region
      _
    $region13: #{tpu_custom_call.1} parent=1 // pred_fallthru
      _
    // Predicated region
    $region14: #{tpu_custom_call.1} parent=1 // pred_check
      _
    $region15: #{tpu_custom_call.1} parent=1 // pred_check_branch
      %20 = sbr.rel (0) target = $region17
    $region16: #{tpu_custom_call.1} parent=1 // pred_region
      _
    $region17: #{tpu_custom_call.1} parent=1 // pred_fallthru
      _
    // Predicated region
    $region18: #{tpu_custom_call.1} parent=1 // pred_check
      _
    $region19: #{tpu_custom_call.1} parent=1 // pred_check_branch
      %22 = sbr.rel (0) target = $region21
    $region20: #{tpu_custom_call.1} parent=1 // pred_region
      _
    $region21: #{tpu_custom_call.1} parent=1 // pred_fallthru
      _
    // Predicated region
    $region22: #{tpu_custom_call.1} parent=1 // pred_check
      _
    $region23: #{tpu_custom_call.1} parent=1 // pred_check_branch
      %24 = sbr.rel (0) target = $region25
    $region24: #{tpu_custom_call.1} parent=1 // pred_region
      _
    $region25: #{tpu_custom_call.1} parent=1 // pred_fallthru
      _
    // Predicated region
    $region26: #{tpu_custom_call.1} parent=1 // pred_check
      _
    $region27: #{tpu_custom_call.1} parent=1 // pred_check_branch
      %26 = sbr.rel (0) target = $region29
    $region28: #{tpu_custom_call.1} parent=1 // pred_region
      _
    $region29: #{tpu_custom_call.1} parent=1 // pred_fallthru
      _
    %v27 = vld [vmem:[%s0] sm:$0xff]
    %v28 = vld [vmem:[%s0 + $0x8] sm:$0xff]
    %v29 = vmul.f32 %v27, %v27
    %v30 = vmul.f32 %v28, %v28
    %vm31 = vcmask 261120
    %v32 = vsel %vm31, %v29, 0.0
    %33 = vadd.xlane.f32.xlu0 %v32
    %v34 = vpop.xlane.xlu0 %33
    %v35 = vsel %vm31, %v30, 0.0
    %36 = vadd.xlane.f32.xlu0 %v35
    %v37 = vpop.xlane.xlu0 %36
    %v38 = vrcp.pop 32.0
    %v39 = vmul.f32 %v34, %v38
    %v40 = vmul.f32 %v37, %v38
    %v41 = vadd.f32 %v39, 1e-06
    %v42 = vadd.f32 %v40, 1e-06
    %v43 = vrsqrt.pop %v41
    %v44 = vrsqrt.pop %v42
    %v45 = vmul.f32 %v27, %v43
    %v46 = vmul.f32 %v28, %v44
    %v47 = vld [vmem:[%s5] sm:$0x1]
    %v49 = vlaneseq
    %v50 = vshrl.u32 %v49, 7
    %v51 = vsub.s32 0, %v50
    %v52 = vrot.slane %v47, %v51
    %v54 = vmul.f32 %v45, %v52
    %v55 = vmul.f32 %v46, %v52
    %v56 = vld [vmem:[%s1] sm:$0xff]
    %v57 = vld [vmem:[%s1 + $0x8] sm:$0xff]
    %v58 = vld [vmem:[%s1 + $0x10] sm:$0xff]
    %v59 = vld [vmem:[%s1 + $0x18] sm:$0xff]
    %v60 = vld [vmem:[%s1 + $0x20] sm:$0xff]
    %v61 = vld [vmem:[%s1 + $0x28] sm:$0xff]
    %v62 = vld [vmem:[%s1 + $0x30] sm:$0xff]
    %v63 = vld [vmem:[%s1 + $0x38] sm:$0xff]
    %v64 = vld [vmem:[%s1 + $0x40] sm:$0xff]
    %v65 = vld [vmem:[%s1 + $0x48] sm:$0xff]
    %v66 = vld [vmem:[%s1 + $0x50] sm:$0xff]
    %v67 = vld [vmem:[%s1 + $0x58] sm:$0xff]
    %v68 = vld [vmem:[%s1 + $0x60] sm:$0xff]
    %v69 = vld [vmem:[%s1 + $0x68] sm:$0xff]
    %v70 = vld [vmem:[%s1 + $0x70] sm:$0xff]
    %v71 = vld [vmem:[%s1 + $0x78] sm:$0xff]
    %v72 = vld [vmem:[%s1 + $0x80] sm:$0xff]
    %v73 = vld [vmem:[%s1 + $0x88] sm:$0xff]
    %v74 = vld [vmem:[%s1 + $0x90] sm:$0xff]
    %v75 = vld [vmem:[%s1 + $0x98] sm:$0xff]
    %v76 = vld [vmem:[%s1 + $0xa0] sm:$0xff]
    %v77 = vld [vmem:[%s1 + $0xa8] sm:$0xff]
    %v78 = vld [vmem:[%s1 + $0xb0] sm:$0xff]
    %v79 = vld [vmem:[%s1 + $0xb8] sm:$0xff]
    %v80 = vld [vmem:[%s1 + $0xc0] sm:$0xff]
    %v81 = vld [vmem:[%s1 + $0xc8] sm:$0xff]
    %v82 = vld [vmem:[%s1 + $0xd0] sm:$0xff]
    %v83 = vld [vmem:[%s1 + $0xd8] sm:$0xff]
    %v84 = vld [vmem:[%s1 + $0xe0] sm:$0xff]
    %v85 = vld [vmem:[%s1 + $0xe8] sm:$0xff]
    %v86 = vld [vmem:[%s1 + $0xf0] sm:$0xff]
    %v87 = vld [vmem:[%s1 + $0xf8] sm:$0xff]
    %v89 = vsel %vm31, %v54, 0
    %91 = vmatprep.subr.mxu0 0.0
    %92 = vmatpush1.msra.mxu0 %v56
    %93 = vmatprep.subr.mxu0 0.0
    %94 = vmatpush1.msra.mxu0 %v57
    %95 = vmatprep.subr.mxu0 0.0
    %96 = vmatpush1.msra.mxu0 %v58
    %97 = vmatprep.subr.mxu0 0.0
    %98 = vmatpush1.msra.mxu0 %v59
    %99 = vmatprep.subr.mxu0 0.0
    %100 = vmatpush1.msra.mxu0 0.0
    %101 = vmatprep.subr.mxu0 0.0
    %102 = vmatpush1.msra.mxu0 0.0
    %103 = vmatprep.subr.mxu0 0.0
    %104 = vmatpush1.msra.mxu0 0.0
    %105 = vmatprep.subr.mxu0 0.0
    %106 = vmatpush1.msra.mxu0 0.0
    %107 = vmatprep.subr.mxu0 0.0
    %108 = vmatpush1.msra.mxu0 0.0
    %109 = vmatprep.subr.mxu0 0.0
    %110 = vmatpush1.msra.mxu0 0.0
    %111 = vmatprep.subr.mxu0 0.0
    %112 = vmatpush1.msra.mxu0 0.0
    %113 = vmatprep.subr.mxu0 0.0
    %114 = vmatpush1.msra.mxu0 0.0
    %115 = vmatprep.subr.mxu0 0.0
    %116 = vmatpush1.msra.mxu0 0.0
    %117 = vmatprep.subr.mxu0 0.0
    %118 = vmatpush1.msra.mxu0 0.0
    %119 = vmatprep.subr.mxu0 0.0
    %120 = vmatpush1.msra.mxu0 0.0
    %121 = vmatprep.subr.mxu0 0.0
    %122 = vmatpush1.msra.mxu0 0.0
    %123 = vmatprep.subr.mxu0 0.0
    %124 = vmatpush1.msra.mxu0 0.0
    %125 = vmatprep.subr.mxu0 0.0
    %126 = vmatpush1.msra.mxu0 0.0
    %127 = vmatprep.subr.mxu0 0.0
    %128 = vmatpush1.msra.mxu0 0.0
    %129 = vmatprep.subr.mxu0 0.0
    %130 = vmatpush1.msra.mxu0 0.0
    %131 = vmatprep.subr.mxu0 0.0
    %132 = vmatpush1.msra.mxu0 0.0
    %133 = vmatprep.subr.mxu0 0.0
    %134 = vmatpush1.msra.mxu0 0.0
    %135 = vmatprep.subr.mxu0 0.0
    %136 = vmatpush1.msra.mxu0 0.0
    %137 = vmatprep.subr.mxu0 0.0
    %138 = vmatpush1.msra.mxu0 0.0
    %139 = vmatprep.subr.mxu0 0.0
    %140 = vmatpush1.msra.mxu0 0.0
    %141 = vmatprep.subr.mxu0 0.0
    %142 = vmatpush1.msra.mxu0 0.0
    %143 = vmatprep.subr.mxu0 0.0
    %144 = vmatpush1.msra.mxu0 0.0
    %145 = vmatprep.subr.mxu0 0.0
    %146 = vmatpush1.msra.mxu0 0.0
    %147 = vmatprep.subr.mxu0 0.0
    %148 = vmatpush1.msra.mxu0 0.0
    %149 = vmatprep.subr.mxu0 0.0
    %150 = vmatpush1.msra.mxu0 0.0
    %151 = vmatprep.subr.mxu0 0.0
    %152 = vmatpush1.msra.mxu0 0.0
    %153 = vmatprep.subr.mxu0 0.0
    %154 = vmatpush1.msra.mxu0 0.0
    %155 = vmatprep.mubr.f32.mxu0 0.0
    %156 = vmatmul.mubr.f32.gmra.mrb[0].mxu0 %v89
    %v157 = vpop.f32.mrb[0].mxu0
    %v158 = vadd.f32 0.0, %v157
    %v159 = vpop.f32.mrb[0].mxu0
    %160 = vdwg.mxu0
    %161 = vmatprep.subr.mxu0 0.0
    %162 = vmatpush1.msra.mxu0 %v60
    %163 = vmatprep.subr.mxu0 0.0
    %164 = vmatpush1.msra.mxu0 %v61
    %165 = vmatprep.subr.mxu0 0.0
    %166 = vmatpush1.msra.mxu0 %v62
    %167 = vmatprep.subr.mxu0 0.0
    %168 = vmatpush1.msra.mxu0 %v63
    %169 = vmatprep.subr.mxu0 0.0
    %170 = vmatpush1.msra.mxu0 0.0
    %171 = vmatprep.subr.mxu0 0.0
    %172 = vmatpush1.msra.mxu0 0.0
    %173 = vmatprep.subr.mxu0 0.0
    %174 = vmatpush1.msra.mxu0 0.0
    %175 = vmatprep.subr.mxu0 0.0
    %176 = vmatpush1.msra.mxu0 0.0
    %177 = vmatprep.subr.mxu0 0.0
    %178 = vmatpush1.msra.mxu0 0.0
    %179 = vmatprep.subr.mxu0 0.0
    %180 = vmatpush1.msra.mxu0 0.0
    %181 = vmatprep.subr.mxu0 0.0
    %182 = vmatpush1.msra.mxu0 0.0
    %183 = vmatprep.subr.mxu0 0.0
    %184 = vmatpush1.msra.mxu0 0.0
    %185 = vmatprep.subr.mxu0 0.0
    %186 = vmatpush1.msra.mxu0 0.0
    %187 = vmatprep.subr.mxu0 0.0
    %188 = vmatpush1.msra.mxu0 0.0
    %189 = vmatprep.subr.mxu0 0.0
    %190 = vmatpush1.msra.mxu0 0.0
    %191 = vmatprep.subr.mxu0 0.0
    %192 = vmatpush1.msra.mxu0 0.0
    %193 = vmatprep.subr.mxu0 0.0
    %194 = vmatpush1.msra.mxu0 0.0
    %195 = vmatprep.subr.mxu0 0.0
    %196 = vmatpush1.msra.mxu0 0.0
    %197 = vmatprep.subr.mxu0 0.0
    %198 = vmatpush1.msra.mxu0 0.0
    %199 = vmatprep.subr.mxu0 0.0
    %200 = vmatpush1.msra.mxu0 0.0
    %201 = vmatprep.subr.mxu0 0.0
    %202 = vmatpush1.msra.mxu0 0.0
    %203 = vmatprep.subr.mxu0 0.0
    %204 = vmatpush1.msra.mxu0 0.0
    %205 = vmatprep.subr.mxu0 0.0
    %206 = vmatpush1.msra.mxu0 0.0
    %207 = vmatprep.subr.mxu0 0.0
    %208 = vmatpush1.msra.mxu0 0.0
    %209 = vmatprep.subr.mxu0 0.0
    %210 = vmatpush1.msra.mxu0 0.0
    %211 = vmatprep.subr.mxu0 0.0
    %212 = vmatpush1.msra.mxu0 0.0
    %213 = vmatprep.subr.mxu0 0.0
    %214 = vmatpush1.msra.mxu0 0.0
    %215 = vmatprep.subr.mxu0 0.0
    %216 = vmatpush1.msra.mxu0 0.0
    %217 = vmatprep.subr.mxu0 0.0
    %218 = vmatpush1.msra.mxu0 0.0
    %219 = vmatprep.subr.mxu0 0.0
    %220 = vmatpush1.msra.mxu0 0.0
    %221 = vmatprep.subr.mxu0 0.0
    %222 = vmatpush1.msra.mxu0 0.0
    %223 = vmatprep.subr.mxu0 0.0
    %224 = vmatpush1.msra.mxu0 0.0
    %225 = vmatprep.mubr.f32.mxu0 0.0
    %226 = vmatmul.mubr.f32.gmra.mrb[0].mxu0 %v89
    %v227 = vpop.f32.mrb[0].mxu0
    %v228 = vadd.f32 0.0, %v227
    %v229 = vpop.f32.mrb[0].mxu0
    %230 = vdwg.mxu0
    %231 = vmatprep.subr.mxu0 0.0
    %232 = vmatpush1.msra.mxu0 %v64
    %233 = vmatprep.subr.mxu0 0.0
    %234 = vmatpush1.msra.mxu0 %v65
    %235 = vmatprep.subr.mxu0 0.0
    %236 = vmatpush1.msra.mxu0 %v66
    %237 = vmatprep.subr.mxu0 0.0
    %238 = vmatpush1.msra.mxu0 %v67
    %239 = vmatprep.subr.mxu0 0.0
    %240 = vmatpush1.msra.mxu0 0.0
    %241 = vmatprep.subr.mxu0 0.0
    %242 = vmatpush1.msra.mxu0 0.0
    %243 = vmatprep.subr.mxu0 0.0
    %244 = vmatpush1.msra.mxu0 0.0
    %245 = vmatprep.subr.mxu0 0.0
    %246 = vmatpush1.msra.mxu0 0.0
    %247 = vmatprep.subr.mxu0 0.0
    %248 = vmatpush1.msra.mxu0 0.0
    %249 = vmatprep.subr.mxu0 0.0
    %250 = vmatpush1.msra.mxu0 0.0
    %251 = vmatprep.subr.mxu0 0.0
    %252 = vmatpush1.msra.mxu0 0.0
    %253 = vmatprep.subr.mxu0 0.0
    %254 = vmatpush1.msra.mxu0 0.0
    %255 = vmatprep.subr.mxu0 0.0
    %256 = vmatpush1.msra.mxu0 0.0
    %257 = vmatprep.subr.mxu0 0.0
    %258 = vmatpush1.msra.mxu0 0.0
    %259 = vmatprep.subr.mxu0 0.0
    %260 = vmatpush1.msra.mxu0 0.0
    %261 = vmatprep.subr.mxu0 0.0
    %262 = vmatpush1.msra.mxu0 0.0
    %263 = vmatprep.subr.mxu0 0.0
    %264 = vmatpush1.msra.mxu0 0.0
    %265 = vmatprep.subr.mxu0 0.0
    %266 = vmatpush1.msra.mxu0 0.0
    %267 = vmatprep.subr.mxu0 0.0
    %268 = vmatpush1.msra.mxu0 0.0
    %269 = vmatprep.subr.mxu0 0.0
    %270 = vmatpush1.msra.mxu0 0.0
    %271 = vmatprep.subr.mxu0 0.0
    %272 = vmatpush1.msra.mxu0 0.0
    %273 = vmatprep.subr.mxu0 0.0
    %274 = vmatpush1.msra.mxu0 0.0
    %275 = vmatprep.subr.mxu0 0.0
    %276 = vmatpush1.msra.mxu0 0.0
    %277 = vmatprep.subr.mxu0 0.0
    %278 = vmatpush1.msra.mxu0 0.0
    %279 = vmatprep.subr.mxu0 0.0
    %280 = vmatpush1.msra.mxu0 0.0
    %281 = vmatprep.subr.mxu0 0.0
    %282 = vmatpush1.msra.mxu0 0.0
    %283 = vmatprep.subr.mxu0 0.0
    %284 = vmatpush1.msra.mxu0 0.0
    %285 = vmatprep.subr.mxu0 0.0
    %286 = vmatpush1.msra.mxu0 0.0
    %287 = vmatprep.subr.mxu0 0.0
    %288 = vmatpush1.msra.mxu0 0.0
    %289 = vmatprep.subr.mxu0 0.0
    %290 = vmatpush1.msra.mxu0 0.0
    %291 = vmatprep.subr.mxu0 0.0
    %292 = vmatpush1.msra.mxu0 0.0
    %293 = vmatprep.subr.mxu0 0.0
    %294 = vmatpush1.msra.mxu0 0.0
    %295 = vmatprep.mubr.f32.mxu0 0.0
    %296 = vmatmul.mubr.f32.gmra.mrb[0].mxu0 %v89
    %v297 = vpop.f32.mrb[0].mxu0
    %v298 = vadd.f32 0.0, %v297
    %v299 = vpop.f32.mrb[0].mxu0
    %300 = vdwg.mxu0
    %301 = vmatprep.subr.mxu0 0.0
    %302 = vmatpush1.msra.mxu0 %v68
    %303 = vmatprep.subr.mxu0 0.0
    %304 = vmatpush1.msra.mxu0 %v69
    %305 = vmatprep.subr.mxu0 0.0
    %306 = vmatpush1.msra.mxu0 %v70
    %307 = vmatprep.subr.mxu0 0.0
    %308 = vmatpush1.msra.mxu0 %v71
    %309 = vmatprep.subr.mxu0 0.0
    %310 = vmatpush1.msra.mxu0 0.0
    %311 = vmatprep.subr.mxu0 0.0
    %312 = vmatpush1.msra.mxu0 0.0
    %313 = vmatprep.subr.mxu0 0.0
    %314 = vmatpush1.msra.mxu0 0.0
    %315 = vmatprep.subr.mxu0 0.0
    %316 = vmatpush1.msra.mxu0 0.0
    %317 = vmatprep.subr.mxu0 0.0
    %318 = vmatpush1.msra.mxu0 0.0
    %319 = vmatprep.subr.mxu0 0.0
    %320 = vmatpush1.msra.mxu0 0.0
    %321 = vmatprep.subr.mxu0 0.0
    %322 = vmatpush1.msra.mxu0 0.0
    %323 = vmatprep.subr.mxu0 0.0
    %324 = vmatpush1.msra.mxu0 0.0
    %325 = vmatprep.subr.mxu0 0.0
    %326 = vmatpush1.msra.mxu0 0.0
    %327 = vmatprep.subr.mxu0 0.0
    %328 = vmatpush1.msra.mxu0 0.0
    %329 = vmatprep.subr.mxu0 0.0
    %330 = vmatpush1.msra.mxu0 0.0
    %331 = vmatprep.subr.mxu0 0.0
    %332 = vmatpush1.msra.mxu0 0.0
    %333 = vmatprep.subr.mxu0 0.0
    %334 = vmatpush1.msra.mxu0 0.0
    %335 = vmatprep.subr.mxu0 0.0
    %336 = vmatpush1.msra.mxu0 0.0
    %337 = vmatprep.subr.mxu0 0.0
    %338 = vmatpush1.msra.mxu0 0.0
    %339 = vmatprep.subr.mxu0 0.0
    %340 = vmatpush1.msra.mxu0 0.0
    %341 = vmatprep.subr.mxu0 0.0
    %342 = vmatpush1.msra.mxu0 0.0
    %343 = vmatprep.subr.mxu0 0.0
    %344 = vmatpush1.msra.mxu0 0.0
    %345 = vmatprep.subr.mxu0 0.0
    %346 = vmatpush1.msra.mxu0 0.0
    %347 = vmatprep.subr.mxu0 0.0
    %348 = vmatpush1.msra.mxu0 0.0
    %349 = vmatprep.subr.mxu0 0.0
    %350 = vmatpush1.msra.mxu0 0.0
    %351 = vmatprep.subr.mxu0 0.0
    %352 = vmatpush1.msra.mxu0 0.0
    %353 = vmatprep.subr.mxu0 0.0
    %354 = vmatpush1.msra.mxu0 0.0
    %355 = vmatprep.subr.mxu0 0.0
    %356 = vmatpush1.msra.mxu0 0.0
    %357 = vmatprep.subr.mxu0 0.0
    %358 = vmatpush1.msra.mxu0 0.0
    %359 = vmatprep.subr.mxu0 0.0
    %360 = vmatpush1.msra.mxu0 0.0
    %361 = vmatprep.subr.mxu0 0.0
    %362 = vmatpush1.msra.mxu0 0.0
    %363 = vmatprep.subr.mxu0 0.0
    %364 = vmatpush1.msra.mxu0 0.0
    %365 = vmatprep.mubr.f32.mxu0 0.0
    %366 = vmatmul.mubr.f32.gmra.mrb[0].mxu0 %v89
    %v367 = vpop.f32.mrb[0].mxu0
    %v368 = vadd.f32 0.0, %v367
    %v369 = vpop.f32.mrb[0].mxu0
    %370 = vdwg.mxu0
    %v372 = vsel %vm31, %v55, 0
    %374 = vmatprep.subr.mxu0 0.0
    %375 = vmatpush1.msra.mxu0 %v72
    %376 = vmatprep.subr.mxu0 0.0
    %377 = vmatpush1.msra.mxu0 %v73
    %378 = vmatprep.subr.mxu0 0.0
    %379 = vmatpush1.msra.mxu0 %v74
    %380 = vmatprep.subr.mxu0 0.0
    %381 = vmatpush1.msra.mxu0 %v75
    %382 = vmatprep.subr.mxu0 0.0
    %383 = vmatpush1.msra.mxu0 0.0
    %384 = vmatprep.subr.mxu0 0.0
    %385 = vmatpush1.msra.mxu0 0.0
    %386 = vmatprep.subr.mxu0 0.0
    %387 = vmatpush1.msra.mxu0 0.0
    %388 = vmatprep.subr.mxu0 0.0
    %389 = vmatpush1.msra.mxu0 0.0
    %390 = vmatprep.subr.mxu0 0.0
    %391 = vmatpush1.msra.mxu0 0.0
    %392 = vmatprep.subr.mxu0 0.0
    %393 = vmatpush1.msra.mxu0 0.0
    %394 = vmatprep.subr.mxu0 0.0
    %395 = vmatpush1.msra.mxu0 0.0
    %396 = vmatprep.subr.mxu0 0.0
    %397 = vmatpush1.msra.mxu0 0.0
    %398 = vmatprep.subr.mxu0 0.0
    %399 = vmatpush1.msra.mxu0 0.0
    %400 = vmatprep.subr.mxu0 0.0
    %401 = vmatpush1.msra.mxu0 0.0
    %402 = vmatprep.subr.mxu0 0.0
    %403 = vmatpush1.msra.mxu0 0.0
    %404 = vmatprep.subr.mxu0 0.0
    %405 = vmatpush1.msra.mxu0 0.0
    %406 = vmatprep.subr.mxu0 0.0
    %407 = vmatpush1.msra.mxu0 0.0
    %408 = vmatprep.subr.mxu0 0.0
    %409 = vmatpush1.msra.mxu0 0.0
    %410 = vmatprep.subr.mxu0 0.0
    %411 = vmatpush1.msra.mxu0 0.0
    %412 = vmatprep.subr.mxu0 0.0
    %413 = vmatpush1.msra.mxu0 0.0
    %414 = vmatprep.subr.mxu0 0.0
    %415 = vmatpush1.msra.mxu0 0.0
    %416 = vmatprep.subr.mxu0 0.0
    %417 = vmatpush1.msra.mxu0 0.0
    %418 = vmatprep.subr.mxu0 0.0
    %419 = vmatpush1.msra.mxu0 0.0
    %420 = vmatprep.subr.mxu0 0.0
    %421 = vmatpush1.msra.mxu0 0.0
    %422 = vmatprep.subr.mxu0 0.0
    %423 = vmatpush1.msra.mxu0 0.0
    %424 = vmatprep.subr.mxu0 0.0
    %425 = vmatpush1.msra.mxu0 0.0
    %426 = vmatprep.subr.mxu0 0.0
    %427 = vmatpush1.msra.mxu0 0.0
    %428 = vmatprep.subr.mxu0 0.0
    %429 = vmatpush1.msra.mxu0 0.0
    %430 = vmatprep.subr.mxu0 0.0
    %431 = vmatpush1.msra.mxu0 0.0
    %432 = vmatprep.subr.mxu0 0.0
    %433 = vmatpush1.msra.mxu0 0.0
    %434 = vmatprep.subr.mxu0 0.0
    %435 = vmatpush1.msra.mxu0 0.0
    %436 = vmatprep.subr.mxu0 0.0
    %437 = vmatpush1.msra.mxu0 0.0
    %438 = vmatprep.mubr.f32.mxu0 0.0
    %439 = vmatmul.mubr.f32.gmra.mrb[0].mxu0 %v372
    %v440 = vpop.f32.mrb[0].mxu0
    %v441 = vadd.f32 0.0, %v440
    %v442 = vpop.f32.mrb[0].mxu0
    %443 = vdwg.mxu0
    %444 = vmatprep.subr.mxu0 0.0
    %445 = vmatpush1.msra.mxu0 %v76
    %446 = vmatprep.subr.mxu0 0.0
    %447 = vmatpush1.msra.mxu0 %v77
    %448 = vmatprep.subr.mxu0 0.0
    %449 = vmatpush1.msra.mxu0 %v78
    %450 = vmatprep.subr.mxu0 0.0
    %451 = vmatpush1.msra.mxu0 %v79
    %452 = vmatprep.subr.mxu0 0.0
    %453 = vmatpush1.msra.mxu0 0.0
    %454 = vmatprep.subr.mxu0 0.0
    %455 = vmatpush1.msra.mxu0 0.0
    %456 = vmatprep.subr.mxu0 0.0
    %457 = vmatpush1.msra.mxu0 0.0
    %458 = vmatprep.subr.mxu0 0.0
    %459 = vmatpush1.msra.mxu0 0.0
    %460 = vmatprep.subr.mxu0 0.0
    %461 = vmatpush1.msra.mxu0 0.0
    %462 = vmatprep.subr.mxu0 0.0
    %463 = vmatpush1.msra.mxu0 0.0
    %464 = vmatprep.subr.mxu0 0.0
    %465 = vmatpush1.msra.mxu0 0.0
    %466 = vmatprep.subr.mxu0 0.0
    %467 = vmatpush1.msra.mxu0 0.0
    %468 = vmatprep.subr.mxu0 0.0
    %469 = vmatpush1.msra.mxu0 0.0
    %470 = vmatprep.subr.mxu0 0.0
    %471 = vmatpush1.msra.mxu0 0.0
    %472 = vmatprep.subr.mxu0 0.0
    %473 = vmatpush1.msra.mxu0 0.0
    %474 = vmatprep.subr.mxu0 0.0
    %475 = vmatpush1.msra.mxu0 0.0
    %476 = vmatprep.subr.mxu0 0.0
    %477 = vmatpush1.msra.mxu0 0.0
    %478 = vmatprep.subr.mxu0 0.0
    %479 = vmatpush1.msra.mxu0 0.0
    %480 = vmatprep.subr.mxu0 0.0
    %481 = vmatpush1.msra.mxu0 0.0
    %482 = vmatprep.subr.mxu0 0.0
    %483 = vmatpush1.msra.mxu0 0.0
    %484 = vmatprep.subr.mxu0 0.0
    %485 = vmatpush1.msra.mxu0 0.0
    %486 = vmatprep.subr.mxu0 0.0
    %487 = vmatpush1.msra.mxu0 0.0
    %488 = vmatprep.subr.mxu0 0.0
    %489 = vmatpush1.msra.mxu0 0.0
    %490 = vmatprep.subr.mxu0 0.0
    %491 = vmatpush1.msra.mxu0 0.0
    %492 = vmatprep.subr.mxu0 0.0
    %493 = vmatpush1.msra.mxu0 0.0
    %494 = vmatprep.subr.mxu0 0.0
    %495 = vmatpush1.msra.mxu0 0.0
    %496 = vmatprep.subr.mxu0 0.0
    %497 = vmatpush1.msra.mxu0 0.0
    %498 = vmatprep.subr.mxu0 0.0
    %499 = vmatpush1.msra.mxu0 0.0
    %500 = vmatprep.subr.mxu0 0.0
    %501 = vmatpush1.msra.mxu0 0.0
    %502 = vmatprep.subr.mxu0 0.0
    %503 = vmatpush1.msra.mxu0 0.0
    %504 = vmatprep.subr.mxu0 0.0
    %505 = vmatpush1.msra.mxu0 0.0
    %506 = vmatprep.subr.mxu0 0.0
    %507 = vmatpush1.msra.mxu0 0.0
    %508 = vmatprep.mubr.f32.mxu0 0.0
    %509 = vmatmul.mubr.f32.gmra.mrb[0].mxu0 %v372
    %v510 = vpop.f32.mrb[0].mxu0
    %v511 = vadd.f32 0.0, %v510
    %v512 = vpop.f32.mrb[0].mxu0
    %513 = vdwg.mxu0
    %514 = vmatprep.subr.mxu0 0.0
    %515 = vmatpush1.msra.mxu0 %v80
    %516 = vmatprep.subr.mxu0 0.0
    %517 = vmatpush1.msra.mxu0 %v81
    %518 = vmatprep.subr.mxu0 0.0
    %519 = vmatpush1.msra.mxu0 %v82
    %520 = vmatprep.subr.mxu0 0.0
    %521 = vmatpush1.msra.mxu0 %v83
    %522 = vmatprep.subr.mxu0 0.0
    %523 = vmatpush1.msra.mxu0 0.0
    %524 = vmatprep.subr.mxu0 0.0
    %525 = vmatpush1.msra.mxu0 0.0
    %526 = vmatprep.subr.mxu0 0.0
    %527 = vmatpush1.msra.mxu0 0.0
    %528 = vmatprep.subr.mxu0 0.0
    %529 = vmatpush1.msra.mxu0 0.0
    %530 = vmatprep.subr.mxu0 0.0
    %531 = vmatpush1.msra.mxu0 0.0
    %532 = vmatprep.subr.mxu0 0.0
    %533 = vmatpush1.msra.mxu0 0.0
    %534 = vmatprep.subr.mxu0 0.0
    %535 = vmatpush1.msra.mxu0 0.0
    %536 = vmatprep.subr.mxu0 0.0
    %537 = vmatpush1.msra.mxu0 0.0
    %538 = vmatprep.subr.mxu0 0.0
    %539 = vmatpush1.msra.mxu0 0.0
    %540 = vmatprep.subr.mxu0 0.0
    %541 = vmatpush1.msra.mxu0 0.0
    %542 = vmatprep.subr.mxu0 0.0
    %543 = vmatpush1.msra.mxu0 0.0
    %544 = vmatprep.subr.mxu0 0.0
    %545 = vmatpush1.msra.mxu0 0.0
    %546 = vmatprep.subr.mxu0 0.0
    %547 = vmatpush1.msra.mxu0 0.0
    %548 = vmatprep.subr.mxu0 0.0
    %549 = vmatpush1.msra.mxu0 0.0
    %550 = vmatprep.subr.mxu0 0.0
    %551 = vmatpush1.msra.mxu0 0.0
    %552 = vmatprep.subr.mxu0 0.0
    %553 = vmatpush1.msra.mxu0 0.0
    %554 = vmatprep.subr.mxu0 0.0
    %555 = vmatpush1.msra.mxu0 0.0
    %556 = vmatprep.subr.mxu0 0.0
    %557 = vmatpush1.msra.mxu0 0.0
    %558 = vmatprep.subr.mxu0 0.0
    %559 = vmatpush1.msra.mxu0 0.0
    %560 = vmatprep.subr.mxu0 0.0
    %561 = vmatpush1.msra.mxu0 0.0
    %562 = vmatprep.subr.mxu0 0.0
    %563 = vmatpush1.msra.mxu0 0.0
    %564 = vmatprep.subr.mxu0 0.0
    %565 = vmatpush1.msra.mxu0 0.0
    %566 = vmatprep.subr.mxu0 0.0
    %567 = vmatpush1.msra.mxu0 0.0
    %568 = vmatprep.subr.mxu0 0.0
    %569 = vmatpush1.msra.mxu0 0.0
    %570 = vmatprep.subr.mxu0 0.0
    %571 = vmatpush1.msra.mxu0 0.0
    %572 = vmatprep.subr.mxu0 0.0
    %573 = vmatpush1.msra.mxu0 0.0
    %574 = vmatprep.subr.mxu0 0.0
    %575 = vmatpush1.msra.mxu0 0.0
    %576 = vmatprep.subr.mxu0 0.0
    %577 = vmatpush1.msra.mxu0 0.0
    %578 = vmatprep.mubr.f32.mxu0 0.0
    %579 = vmatmul.mubr.f32.gmra.mrb[0].mxu0 %v372
    %v580 = vpop.f32.mrb[0].mxu0
    %v581 = vadd.f32 0.0, %v580
    %v582 = vpop.f32.mrb[0].mxu0
    %583 = vdwg.mxu0
    %584 = vmatprep.subr.mxu0 0.0
    %585 = vmatpush1.msra.mxu0 %v84
    %586 = vmatprep.subr.mxu0 0.0
    %587 = vmatpush1.msra.mxu0 %v85
    %588 = vmatprep.subr.mxu0 0.0
    %589 = vmatpush1.msra.mxu0 %v86
    %590 = vmatprep.subr.mxu0 0.0
    %591 = vmatpush1.msra.mxu0 %v87
    %592 = vmatprep.subr.mxu0 0.0
    %593 = vmatpush1.msra.mxu0 0.0
    %594 = vmatprep.subr.mxu0 0.0
    %595 = vmatpush1.msra.mxu0 0.0
    %596 = vmatprep.subr.mxu0 0.0
    %597 = vmatpush1.msra.mxu0 0.0
    %598 = vmatprep.subr.mxu0 0.0
    %599 = vmatpush1.msra.mxu0 0.0
    %600 = vmatprep.subr.mxu0 0.0
    %601 = vmatpush1.msra.mxu0 0.0
    %602 = vmatprep.subr.mxu0 0.0
    %603 = vmatpush1.msra.mxu0 0.0
    %604 = vmatprep.subr.mxu0 0.0
    %605 = vmatpush1.msra.mxu0 0.0
    %606 = vmatprep.subr.mxu0 0.0
    %607 = vmatpush1.msra.mxu0 0.0
    %608 = vmatprep.subr.mxu0 0.0
    %609 = vmatpush1.msra.mxu0 0.0
    %610 = vmatprep.subr.mxu0 0.0
    %611 = vmatpush1.msra.mxu0 0.0
    %612 = vmatprep.subr.mxu0 0.0
    %613 = vmatpush1.msra.mxu0 0.0
    %614 = vmatprep.subr.mxu0 0.0
    %615 = vmatpush1.msra.mxu0 0.0
    %616 = vmatprep.subr.mxu0 0.0
    %617 = vmatpush1.msra.mxu0 0.0
    %618 = vmatprep.subr.mxu0 0.0
    %619 = vmatpush1.msra.mxu0 0.0
    %620 = vmatprep.subr.mxu0 0.0
    %621 = vmatpush1.msra.mxu0 0.0
    %622 = vmatprep.subr.mxu0 0.0
    %623 = vmatpush1.msra.mxu0 0.0
    %624 = vmatprep.subr.mxu0 0.0
    %625 = vmatpush1.msra.mxu0 0.0
    %626 = vmatprep.subr.mxu0 0.0
    %627 = vmatpush1.msra.mxu0 0.0
    %628 = vmatprep.subr.mxu0 0.0
    %629 = vmatpush1.msra.mxu0 0.0
    %630 = vmatprep.subr.mxu0 0.0
    %631 = vmatpush1.msra.mxu0 0.0
    %632 = vmatprep.subr.mxu0 0.0
    %633 = vmatpush1.msra.mxu0 0.0
    %634 = vmatprep.subr.mxu0 0.0
    %635 = vmatpush1.msra.mxu0 0.0
    %636 = vmatprep.subr.mxu0 0.0
    %637 = vmatpush1.msra.mxu0 0.0
    %638 = vmatprep.subr.mxu0 0.0
    %639 = vmatpush1.msra.mxu0 0.0
    %640 = vmatprep.subr.mxu0 0.0
    %641 = vmatpush1.msra.mxu0 0.0
    %642 = vmatprep.subr.mxu0 0.0
    %643 = vmatpush1.msra.mxu0 0.0
    %644 = vmatprep.subr.mxu0 0.0
    %645 = vmatpush1.msra.mxu0 0.0
    %646 = vmatprep.subr.mxu0 0.0
    %647 = vmatpush1.msra.mxu0 0.0
    %648 = vmatprep.mubr.f32.mxu0 0.0
    %649 = vmatmul.mubr.f32.gmra.mrb[0].mxu0 %v372
    %v650 = vpop.f32.mrb[0].mxu0
    %v651 = vadd.f32 0.0, %v650
    %v652 = vpop.f32.mrb[0].mxu0
    %653 = vdwg.mxu0
    %655 = vrot.lane.b32.xlu0 %v158, 120
    %v656 = vpop.permute.xlu0 %655
    %vm657 = vcmask 64512
    %v658 = vsel %vm657, %v158, 0
    %v660 = vsel %vm657, %v656, 0
    %662 = vmatprep.subr.mxu0 0.0
    %663 = vmatpush1.xpose.msra.mxu0 %v660
    %664 = vmatprep.subr.mxu0 0.0
    %665 = vmatpush1.xpose.msra.mxu0 0.0
    %666 = vmatprep.subr.mxu0 0.0
    %667 = vmatpush1.xpose.msra.mxu0 0.0
    %668 = vmatprep.subr.mxu0 0.0
    %669 = vmatpush1.xpose.msra.mxu0 0.0
    %670 = vmatprep.subr.mxu0 0.0
    %671 = vmatpush1.xpose.msra.mxu0 0.0
    %672 = vmatprep.subr.mxu0 0.0
    %673 = vmatpush1.xpose.msra.mxu0 0.0
    %674 = vmatprep.subr.mxu0 0.0
    %675 = vmatpush1.xpose.msra.mxu0 0.0
    %676 = vmatprep.subr.mxu0 0.0
    %677 = vmatpush1.xpose.msra.mxu0 0.0
    %678 = vmatprep.subr.mxu0 0.0
    %679 = vmatpush1.xpose.msra.mxu0 0.0
    %680 = vmatprep.subr.mxu0 0.0
    %681 = vmatpush1.xpose.msra.mxu0 0.0
    %682 = vmatprep.subr.mxu0 0.0
    %683 = vmatpush1.xpose.msra.mxu0 0.0
    %684 = vmatprep.subr.mxu0 0.0
    %685 = vmatpush1.xpose.msra.mxu0 0.0
    %686 = vmatprep.subr.mxu0 0.0
    %687 = vmatpush1.xpose.msra.mxu0 0.0
    %688 = vmatprep.subr.mxu0 0.0
    %689 = vmatpush1.xpose.msra.mxu0 0.0
    %690 = vmatprep.subr.mxu0 0.0
    %691 = vmatpush1.xpose.msra.mxu0 0.0
    %692 = vmatprep.subr.mxu0 0.0
    %693 = vmatpush1.xpose.msra.mxu0 0.0
    %694 = vmatprep.subr.mxu0 0.0
    %695 = vmatpush1.xpose.msra.mxu0 0.0
    %696 = vmatprep.subr.mxu0 0.0
    %697 = vmatpush1.xpose.msra.mxu0 0.0
    %698 = vmatprep.subr.mxu0 0.0
    %699 = vmatpush1.xpose.msra.mxu0 0.0
    %700 = vmatprep.subr.mxu0 0.0
    %701 = vmatpush1.xpose.msra.mxu0 0.0
    %702 = vmatprep.subr.mxu0 0.0
    %703 = vmatpush1.xpose.msra.mxu0 0.0
    %704 = vmatprep.subr.mxu0 0.0
    %705 = vmatpush1.xpose.msra.mxu0 0.0
    %706 = vmatprep.subr.mxu0 0.0
    %707 = vmatpush1.xpose.msra.mxu0 0.0
    %708 = vmatprep.subr.mxu0 0.0
    %709 = vmatpush1.xpose.msra.mxu0 0.0
    %710 = vmatprep.subr.mxu0 0.0
    %711 = vmatpush1.xpose.msra.mxu0 0.0
    %712 = vmatprep.subr.mxu0 0.0
    %713 = vmatpush1.xpose.msra.mxu0 0.0
    %714 = vmatprep.subr.mxu0 0.0
    %715 = vmatpush1.xpose.msra.mxu0 0.0
    %716 = vmatprep.subr.mxu0 0.0
    %717 = vmatpush1.xpose.msra.mxu0 0.0
    %718 = vmatprep.subr.mxu0 0.0
    %719 = vmatpush1.xpose.msra.mxu0 0.0
    %720 = vmatprep.subr.mxu0 0.0
    %721 = vmatpush1.xpose.msra.mxu0 0.0
    %722 = vmatprep.subr.mxu0 0.0
    %723 = vmatpush1.xpose.msra.mxu0 0.0
    %724 = vmatprep.subr.mxu0 0.0
    %725 = vmatpush1.xpose.msra.mxu0 0.0
    %726 = vmatprep.mubr.f32.mxu0 0.0
    %727 = vmatmul.mubr.f32.gmra.mrb[0].mxu0 %v658
    %v728 = vpop.f32.mrb[0].mxu0
    %v729 = vadd.f32 0.0, %v728
    %v730 = vpop.f32.mrb[0].mxu0
    %731 = vdwg.mxu0
    %733 = vrot.lane.b32.xlu0 %v228, 120
    %v734 = vpop.permute.xlu0 %733
    %v735 = vsel %vm657, %v228, 0
    %v737 = vsel %vm657, %v734, 0
    %739 = vmatprep.subr.mxu0 0.0
    %740 = vmatpush1.xpose.msra.mxu0 %v737
    %741 = vmatprep.subr.mxu0 0.0
    %742 = vmatpush1.xpose.msra.mxu0 0.0
    %743 = vmatprep.subr.mxu0 0.0
    %744 = vmatpush1.xpose.msra.mxu0 0.0
    %745 = vmatprep.subr.mxu0 0.0
    %746 = vmatpush1.xpose.msra.mxu0 0.0
    %747 = vmatprep.subr.mxu0 0.0
    %748 = vmatpush1.xpose.msra.mxu0 0.0
    %749 = vmatprep.subr.mxu0 0.0
    %750 = vmatpush1.xpose.msra.mxu0 0.0
    %751 = vmatprep.subr.mxu0 0.0
    %752 = vmatpush1.xpose.msra.mxu0 0.0
    %753 = vmatprep.subr.mxu0 0.0
    %754 = vmatpush1.xpose.msra.mxu0 0.0
    %755 = vmatprep.subr.mxu0 0.0
    %756 = vmatpush1.xpose.msra.mxu0 0.0
    %757 = vmatprep.subr.mxu0 0.0
    %758 = vmatpush1.xpose.msra.mxu0 0.0
    %759 = vmatprep.subr.mxu0 0.0
    %760 = vmatpush1.xpose.msra.mxu0 0.0
    %761 = vmatprep.subr.mxu0 0.0
    %762 = vmatpush1.xpose.msra.mxu0 0.0
    %763 = vmatprep.subr.mxu0 0.0
    %764 = vmatpush1.xpose.msra.mxu0 0.0
    %765 = vmatprep.subr.mxu0 0.0
    %766 = vmatpush1.xpose.msra.mxu0 0.0
    %767 = vmatprep.subr.mxu0 0.0
    %768 = vmatpush1.xpose.msra.mxu0 0.0
    %769 = vmatprep.subr.mxu0 0.0
    %770 = vmatpush1.xpose.msra.mxu0 0.0
    %771 = vmatprep.subr.mxu0 0.0
    %772 = vmatpush1.xpose.msra.mxu0 0.0
    %773 = vmatprep.subr.mxu0 0.0
    %774 = vmatpush1.xpose.msra.mxu0 0.0
    %775 = vmatprep.subr.mxu0 0.0
    %776 = vmatpush1.xpose.msra.mxu0 0.0
    %777 = vmatprep.subr.mxu0 0.0
    %778 = vmatpush1.xpose.msra.mxu0 0.0
    %779 = vmatprep.subr.mxu0 0.0
    %780 = vmatpush1.xpose.msra.mxu0 0.0
    %781 = vmatprep.subr.mxu0 0.0
    %782 = vmatpush1.xpose.msra.mxu0 0.0
    %783 = vmatprep.subr.mxu0 0.0
    %784 = vmatpush1.xpose.msra.mxu0 0.0
    %785 = vmatprep.subr.mxu0 0.0
    %786 = vmatpush1.xpose.msra.mxu0 0.0
    %787 = vmatprep.subr.mxu0 0.0
    %788 = vmatpush1.xpose.msra.mxu0 0.0
    %789 = vmatprep.subr.mxu0 0.0
    %790 = vmatpush1.xpose.msra.mxu0 0.0
    %791 = vmatprep.subr.mxu0 0.0
    %792 = vmatpush1.xpose.msra.mxu0 0.0
    %793 = vmatprep.subr.mxu0 0.0
    %794 = vmatpush1.xpose.msra.mxu0 0.0
    %795 = vmatprep.subr.mxu0 0.0
    %796 = vmatpush1.xpose.msra.mxu0 0.0
    %797 = vmatprep.subr.mxu0 0.0
    %798 = vmatpush1.xpose.msra.mxu0 0.0
    %799 = vmatprep.subr.mxu0 0.0
    %800 = vmatpush1.xpose.msra.mxu0 0.0
    %801 = vmatprep.subr.mxu0 0.0
    %802 = vmatpush1.xpose.msra.mxu0 0.0
    %803 = vmatprep.mubr.f32.mxu0 0.0
    %804 = vmatmul.mubr.f32.gmra.mrb[0].mxu0 %v735
    %v805 = vpop.f32.mrb[0].mxu0
    %v806 = vadd.f32 0.0, %v805
    %v807 = vpop.f32.mrb[0].mxu0
    %808 = vdwg.mxu0
    %810 = vrot.lane.b32.xlu0 %v298, 120
    %v811 = vpop.permute.xlu0 %810
    %v812 = vsel %vm657, %v298, 0
    %v814 = vsel %vm657, %v811, 0
    %816 = vmatprep.subr.mxu0 0.0
    %817 = vmatpush1.xpose.msra.mxu0 %v814
    %818 = vmatprep.subr.mxu0 0.0
    %819 = vmatpush1.xpose.msra.mxu0 0.0
    %820 = vmatprep.subr.mxu0 0.0
    %821 = vmatpush1.xpose.msra.mxu0 0.0
    %822 = vmatprep.subr.mxu0 0.0
    %823 = vmatpush1.xpose.msra.mxu0 0.0
    %824 = vmatprep.subr.mxu0 0.0
    %825 = vmatpush1.xpose.msra.mxu0 0.0
    %826 = vmatprep.subr.mxu0 0.0
    %827 = vmatpush1.xpose.msra.mxu0 0.0
    %828 = vmatprep.subr.mxu0 0.0
    %829 = vmatpush1.xpose.msra.mxu0 0.0
    %830 = vmatprep.subr.mxu0 0.0
    %831 = vmatpush1.xpose.msra.mxu0 0.0
    %832 = vmatprep.subr.mxu0 0.0
    %833 = vmatpush1.xpose.msra.mxu0 0.0
    %834 = vmatprep.subr.mxu0 0.0
    %835 = vmatpush1.xpose.msra.mxu0 0.0
    %836 = vmatprep.subr.mxu0 0.0
    %837 = vmatpush1.xpose.msra.mxu0 0.0
    %838 = vmatprep.subr.mxu0 0.0
    %839 = vmatpush1.xpose.msra.mxu0 0.0
    %840 = vmatprep.subr.mxu0 0.0
    %841 = vmatpush1.xpose.msra.mxu0 0.0
    %842 = vmatprep.subr.mxu0 0.0
    %843 = vmatpush1.xpose.msra.mxu0 0.0
    %844 = vmatprep.subr.mxu0 0.0
    %845 = vmatpush1.xpose.msra.mxu0 0.0
    %846 = vmatprep.subr.mxu0 0.0
    %847 = vmatpush1.xpose.msra.mxu0 0.0
    %848 = vmatprep.subr.mxu0 0.0
    %849 = vmatpush1.xpose.msra.mxu0 0.0
    %850 = vmatprep.subr.mxu0 0.0
    %851 = vmatpush1.xpose.msra.mxu0 0.0
    %852 = vmatprep.subr.mxu0 0.0
    %853 = vmatpush1.xpose.msra.mxu0 0.0
    %854 = vmatprep.subr.mxu0 0.0
    %855 = vmatpush1.xpose.msra.mxu0 0.0
    %856 = vmatprep.subr.mxu0 0.0
    %857 = vmatpush1.xpose.msra.mxu0 0.0
    %858 = vmatprep.subr.mxu0 0.0
    %859 = vmatpush1.xpose.msra.mxu0 0.0
    %860 = vmatprep.subr.mxu0 0.0
    %861 = vmatpush1.xpose.msra.mxu0 0.0
    %862 = vmatprep.subr.mxu0 0.0
    %863 = vmatpush1.xpose.msra.mxu0 0.0
    %864 = vmatprep.subr.mxu0 0.0
    %865 = vmatpush1.xpose.msra.mxu0 0.0
    %866 = vmatprep.subr.mxu0 0.0
    %867 = vmatpush1.xpose.msra.mxu0 0.0
    %868 = vmatprep.subr.mxu0 0.0
    %869 = vmatpush1.xpose.msra.mxu0 0.0
    %870 = vmatprep.subr.mxu0 0.0
    %871 = vmatpush1.xpose.msra.mxu0 0.0
    %872 = vmatprep.subr.mxu0 0.0
    %873 = vmatpush1.xpose.msra.mxu0 0.0
    %874 = vmatprep.subr.mxu0 0.0
    %875 = vmatpush1.xpose.msra.mxu0 0.0
    %876 = vmatprep.subr.mxu0 0.0
    %877 = vmatpush1.xpose.msra.mxu0 0.0
    %878 = vmatprep.subr.mxu0 0.0
    %879 = vmatpush1.xpose.msra.mxu0 0.0
    %880 = vmatprep.mubr.f32.mxu0 0.0
    %881 = vmatmul.mubr.f32.gmra.mrb[0].mxu0 %v812
    %v882 = vpop.f32.mrb[0].mxu0
    %v883 = vadd.f32 0.0, %v882
    %v884 = vpop.f32.mrb[0].mxu0
    %885 = vdwg.mxu0
    %887 = vrot.lane.b32.xlu0 %v368, 120
    %v888 = vpop.permute.xlu0 %887
    %v889 = vsel %vm657, %v368, 0
    %v891 = vsel %vm657, %v888, 0
    %893 = vmatprep.subr.mxu0 0.0
    %894 = vmatpush1.xpose.msra.mxu0 %v891
    %895 = vmatprep.subr.mxu0 0.0
    %896 = vmatpush1.xpose.msra.mxu0 0.0
    %897 = vmatprep.subr.mxu0 0.0
    %898 = vmatpush1.xpose.msra.mxu0 0.0
    %899 = vmatprep.subr.mxu0 0.0
    %900 = vmatpush1.xpose.msra.mxu0 0.0
    %901 = vmatprep.subr.mxu0 0.0
    %902 = vmatpush1.xpose.msra.mxu0 0.0
    %903 = vmatprep.subr.mxu0 0.0
    %904 = vmatpush1.xpose.msra.mxu0 0.0
    %905 = vmatprep.subr.mxu0 0.0
    %906 = vmatpush1.xpose.msra.mxu0 0.0
    %907 = vmatprep.subr.mxu0 0.0
    %908 = vmatpush1.xpose.msra.mxu0 0.0
    %909 = vmatprep.subr.mxu0 0.0
    %910 = vmatpush1.xpose.msra.mxu0 0.0
    %911 = vmatprep.subr.mxu0 0.0
    %912 = vmatpush1.xpose.msra.mxu0 0.0
    %913 = vmatprep.subr.mxu0 0.0
    %914 = vmatpush1.xpose.msra.mxu0 0.0
    %915 = vmatprep.subr.mxu0 0.0
    %916 = vmatpush1.xpose.msra.mxu0 0.0
    %917 = vmatprep.subr.mxu0 0.0
    %918 = vmatpush1.xpose.msra.mxu0 0.0
    %919 = vmatprep.subr.mxu0 0.0
    %920 = vmatpush1.xpose.msra.mxu0 0.0
    %921 = vmatprep.subr.mxu0 0.0
    %922 = vmatpush1.xpose.msra.mxu0 0.0
    %923 = vmatprep.subr.mxu0 0.0
    %924 = vmatpush1.xpose.msra.mxu0 0.0
    %925 = vmatprep.subr.mxu0 0.0
    %926 = vmatpush1.xpose.msra.mxu0 0.0
    %927 = vmatprep.subr.mxu0 0.0
    %928 = vmatpush1.xpose.msra.mxu0 0.0
    %929 = vmatprep.subr.mxu0 0.0
    %930 = vmatpush1.xpose.msra.mxu0 0.0
    %931 = vmatprep.subr.mxu0 0.0
    %932 = vmatpush1.xpose.msra.mxu0 0.0
    %933 = vmatprep.subr.mxu0 0.0
    %934 = vmatpush1.xpose.msra.mxu0 0.0
    %935 = vmatprep.subr.mxu0 0.0
    %936 = vmatpush1.xpose.msra.mxu0 0.0
    %937 = vmatprep.subr.mxu0 0.0
    %938 = vmatpush1.xpose.msra.mxu0 0.0
    %939 = vmatprep.subr.mxu0 0.0
    %940 = vmatpush1.xpose.msra.mxu0 0.0
    %941 = vmatprep.subr.mxu0 0.0
    %942 = vmatpush1.xpose.msra.mxu0 0.0
    %943 = vmatprep.subr.mxu0 0.0
    %944 = vmatpush1.xpose.msra.mxu0 0.0
    %945 = vmatprep.subr.mxu0 0.0
    %946 = vmatpush1.xpose.msra.mxu0 0.0
    %947 = vmatprep.subr.mxu0 0.0
    %948 = vmatpush1.xpose.msra.mxu0 0.0
    %949 = vmatprep.subr.mxu0 0.0
    %950 = vmatpush1.xpose.msra.mxu0 0.0
    %951 = vmatprep.subr.mxu0 0.0
    %952 = vmatpush1.xpose.msra.mxu0 0.0
    %953 = vmatprep.subr.mxu0 0.0
    %954 = vmatpush1.xpose.msra.mxu0 0.0
    %955 = vmatprep.subr.mxu0 0.0
    %956 = vmatpush1.xpose.msra.mxu0 0.0
    %957 = vmatprep.mubr.f32.mxu0 0.0
    %958 = vmatmul.mubr.f32.gmra.mrb[0].mxu0 %v889
    %v959 = vpop.f32.mrb[0].mxu0
    %v960 = vadd.f32 0.0, %v959
    %v961 = vpop.f32.mrb[0].mxu0
    %962 = vdwg.mxu0
    %964 = vrot.lane.b32.xlu0 %v441, 120
    %v965 = vpop.permute.xlu0 %964
    %v966 = vsel %vm657, %v441, 0
    %v968 = vsel %vm657, %v965, 0
    %970 = vmatprep.subr.mxu0 0.0
    %971 = vmatpush1.xpose.msra.mxu0 %v968
    %972 = vmatprep.subr.mxu0 0.0
    %973 = vmatpush1.xpose.msra.mxu0 0.0
    %974 = vmatprep.subr.mxu0 0.0
    %975 = vmatpush1.xpose.msra.mxu0 0.0
    %976 = vmatprep.subr.mxu0 0.0
    %977 = vmatpush1.xpose.msra.mxu0 0.0
    %978 = vmatprep.subr.mxu0 0.0
    %979 = vmatpush1.xpose.msra.mxu0 0.0
    %980 = vmatprep.subr.mxu0 0.0
    %981 = vmatpush1.xpose.msra.mxu0 0.0
    %982 = vmatprep.subr.mxu0 0.0
    %983 = vmatpush1.xpose.msra.mxu0 0.0
    %984 = vmatprep.subr.mxu0 0.0
    %985 = vmatpush1.xpose.msra.mxu0 0.0
    %986 = vmatprep.subr.mxu0 0.0
    %987 = vmatpush1.xpose.msra.mxu0 0.0
    %988 = vmatprep.subr.mxu0 0.0
    %989 = vmatpush1.xpose.msra.mxu0 0.0
    %990 = vmatprep.subr.mxu0 0.0
    %991 = vmatpush1.xpose.msra.mxu0 0.0
    %992 = vmatprep.subr.mxu0 0.0
    %993 = vmatpush1.xpose.msra.mxu0 0.0
    %994 = vmatprep.subr.mxu0 0.0
    %995 = vmatpush1.xpose.msra.mxu0 0.0
    %996 = vmatprep.subr.mxu0 0.0
    %997 = vmatpush1.xpose.msra.mxu0 0.0
    %998 = vmatprep.subr.mxu0 0.0
    %999 = vmatpush1.xpose.msra.mxu0 0.0
    %1000 = vmatprep.subr.mxu0 0.0
    %1001 = vmatpush1.xpose.msra.mxu0 0.0
    %1002 = vmatprep.subr.mxu0 0.0
    %1003 = vmatpush1.xpose.msra.mxu0 0.0
    %1004 = vmatprep.subr.mxu0 0.0
    %1005 = vmatpush1.xpose.msra.mxu0 0.0
    %1006 = vmatprep.subr.mxu0 0.0
    %1007 = vmatpush1.xpose.msra.mxu0 0.0
    %1008 = vmatprep.subr.mxu0 0.0
    %1009 = vmatpush1.xpose.msra.mxu0 0.0
    %1010 = vmatprep.subr.mxu0 0.0
    %1011 = vmatpush1.xpose.msra.mxu0 0.0
    %1012 = vmatprep.subr.mxu0 0.0
    %1013 = vmatpush1.xpose.msra.mxu0 0.0
    %1014 = vmatprep.subr.mxu0 0.0
    %1015 = vmatpush1.xpose.msra.mxu0 0.0
    %1016 = vmatprep.subr.mxu0 0.0
    %1017 = vmatpush1.xpose.msra.mxu0 0.0
    %1018 = vmatprep.subr.mxu0 0.0
    %1019 = vmatpush1.xpose.msra.mxu0 0.0
    %1020 = vmatprep.subr.mxu0 0.0
    %1021 = vmatpush1.xpose.msra.mxu0 0.0
    %1022 = vmatprep.subr.mxu0 0.0
    %1023 = vmatpush1.xpose.msra.mxu0 0.0
    %1024 = vmatprep.subr.mxu0 0.0
    %1025 = vmatpush1.xpose.msra.mxu0 0.0
    %1026 = vmatprep.subr.mxu0 0.0
    %1027 = vmatpush1.xpose.msra.mxu0 0.0
    %1028 = vmatprep.subr.mxu0 0.0
    %1029 = vmatpush1.xpose.msra.mxu0 0.0
    %1030 = vmatprep.subr.mxu0 0.0
    %1031 = vmatpush1.xpose.msra.mxu0 0.0
    %1032 = vmatprep.subr.mxu0 0.0
    %1033 = vmatpush1.xpose.msra.mxu0 0.0
    %1034 = vmatprep.mubr.f32.mxu0 0.0
    %1035 = vmatmul.mubr.f32.gmra.mrb[0].mxu0 %v966
    %v1036 = vpop.f32.mrb[0].mxu0
    %v1037 = vadd.f32 0.0, %v1036
    %v1038 = vpop.f32.mrb[0].mxu0
    %1039 = vdwg.mxu0
    %1041 = vrot.lane.b32.xlu0 %v511, 120
    %v1042 = vpop.permute.xlu0 %1041
    %v1043 = vsel %vm657, %v511, 0
    %v1045 = vsel %vm657, %v1042, 0
    %1047 = vmatprep.subr.mxu0 0.0
    %1048 = vmatpush1.xpose.msra.mxu0 %v1045
    %1049 = vmatprep.subr.mxu0 0.0
    %1050 = vmatpush1.xpose.msra.mxu0 0.0
    %1051 = vmatprep.subr.mxu0 0.0
    %1052 = vmatpush1.xpose.msra.mxu0 0.0
    %1053 = vmatprep.subr.mxu0 0.0
    %1054 = vmatpush1.xpose.msra.mxu0 0.0
    %1055 = vmatprep.subr.mxu0 0.0
    %1056 = vmatpush1.xpose.msra.mxu0 0.0
    %1057 = vmatprep.subr.mxu0 0.0
    %1058 = vmatpush1.xpose.msra.mxu0 0.0
    %1059 = vmatprep.subr.mxu0 0.0
    %1060 = vmatpush1.xpose.msra.mxu0 0.0
    %1061 = vmatprep.subr.mxu0 0.0
    %1062 = vmatpush1.xpose.msra.mxu0 0.0
    %1063 = vmatprep.subr.mxu0 0.0
    %1064 = vmatpush1.xpose.msra.mxu0 0.0
    %1065 = vmatprep.subr.mxu0 0.0
    %1066 = vmatpush1.xpose.msra.mxu0 0.0
    %1067 = vmatprep.subr.mxu0 0.0
    %1068 = vmatpush1.xpose.msra.mxu0 0.0
    %1069 = vmatprep.subr.mxu0 0.0
    %1070 = vmatpush1.xpose.msra.mxu0 0.0
    %1071 = vmatprep.subr.mxu0 0.0
    %1072 = vmatpush1.xpose.msra.mxu0 0.0
    %1073 = vmatprep.subr.mxu0 0.0
    %1074 = vmatpush1.xpose.msra.mxu0 0.0
    %1075 = vmatprep.subr.mxu0 0.0
    %1076 = vmatpush1.xpose.msra.mxu0 0.0
    %1077 = vmatprep.subr.mxu0 0.0
    %1078 = vmatpush1.xpose.msra.mxu0 0.0
    %1079 = vmatprep.subr.mxu0 0.0
    %1080 = vmatpush1.xpose.msra.mxu0 0.0
    %1081 = vmatprep.subr.mxu0 0.0
    %1082 = vmatpush1.xpose.msra.mxu0 0.0
    %1083 = vmatprep.subr.mxu0 0.0
    %1084 = vmatpush1.xpose.msra.mxu0 0.0
    %1085 = vmatprep.subr.mxu0 0.0
    %1086 = vmatpush1.xpose.msra.mxu0 0.0
    %1087 = vmatprep.subr.mxu0 0.0
    %1088 = vmatpush1.xpose.msra.mxu0 0.0
    %1089 = vmatprep.subr.mxu0 0.0
    %1090 = vmatpush1.xpose.msra.mxu0 0.0
    %1091 = vmatprep.subr.mxu0 0.0
    %1092 = vmatpush1.xpose.msra.mxu0 0.0
    %1093 = vmatprep.subr.mxu0 0.0
    %1094 = vmatpush1.xpose.msra.mxu0 0.0
    %1095 = vmatprep.subr.mxu0 0.0
    %1096 = vmatpush1.xpose.msra.mxu0 0.0
    %1097 = vmatprep.subr.mxu0 0.0
    %1098 = vmatpush1.xpose.msra.mxu0 0.0
    %1099 = vmatprep.subr.mxu0 0.0
    %1100 = vmatpush1.xpose.msra.mxu0 0.0
    %1101 = vmatprep.subr.mxu0 0.0
    %1102 = vmatpush1.xpose.msra.mxu0 0.0
    %1103 = vmatprep.subr.mxu0 0.0
    %1104 = vmatpush1.xpose.msra.mxu0 0.0
    %1105 = vmatprep.subr.mxu0 0.0
    %1106 = vmatpush1.xpose.msra.mxu0 0.0
    %1107 = vmatprep.subr.mxu0 0.0
    %1108 = vmatpush1.xpose.msra.mxu0 0.0
    %1109 = vmatprep.subr.mxu0 0.0
    %1110 = vmatpush1.xpose.msra.mxu0 0.0
    %1111 = vmatprep.mubr.f32.mxu0 0.0
    %1112 = vmatmul.mubr.f32.gmra.mrb[0].mxu0 %v1043
    %v1113 = vpop.f32.mrb[0].mxu0
    %v1114 = vadd.f32 0.0, %v1113
    %v1115 = vpop.f32.mrb[0].mxu0
    %1116 = vdwg.mxu0
    %1118 = vrot.lane.b32.xlu0 %v581, 120
    %v1119 = vpop.permute.xlu0 %1118
    %v1120 = vsel %vm657, %v581, 0
    %v1122 = vsel %vm657, %v1119, 0
    %1124 = vmatprep.subr.mxu0 0.0
    %1125 = vmatpush1.xpose.msra.mxu0 %v1122
    %1126 = vmatprep.subr.mxu0 0.0
    %1127 = vmatpush1.xpose.msra.mxu0 0.0
    %1128 = vmatprep.subr.mxu0 0.0
    %1129 = vmatpush1.xpose.msra.mxu0 0.0
    %1130 = vmatprep.subr.mxu0 0.0
    %1131 = vmatpush1.xpose.msra.mxu0 0.0
    %1132 = vmatprep.subr.mxu0 0.0
    %1133 = vmatpush1.xpose.msra.mxu0 0.0
    %1134 = vmatprep.subr.mxu0 0.0
    %1135 = vmatpush1.xpose.msra.mxu0 0.0
    %1136 = vmatprep.subr.mxu0 0.0
    %1137 = vmatpush1.xpose.msra.mxu0 0.0
    %1138 = vmatprep.subr.mxu0 0.0
    %1139 = vmatpush1.xpose.msra.mxu0 0.0
    %1140 = vmatprep.subr.mxu0 0.0
    %1141 = vmatpush1.xpose.msra.mxu0 0.0
    %1142 = vmatprep.subr.mxu0 0.0
    %1143 = vmatpush1.xpose.msra.mxu0 0.0
    %1144 = vmatprep.subr.mxu0 0.0
    %1145 = vmatpush1.xpose.msra.mxu0 0.0
    %1146 = vmatprep.subr.mxu0 0.0
    %1147 = vmatpush1.xpose.msra.mxu0 0.0
    %1148 = vmatprep.subr.mxu0 0.0
    %1149 = vmatpush1.xpose.msra.mxu0 0.0
    %1150 = vmatprep.subr.mxu0 0.0
    %1151 = vmatpush1.xpose.msra.mxu0 0.0
    %1152 = vmatprep.subr.mxu0 0.0
    %1153 = vmatpush1.xpose.msra.mxu0 0.0
    %1154 = vmatprep.subr.mxu0 0.0
    %1155 = vmatpush1.xpose.msra.mxu0 0.0
    %1156 = vmatprep.subr.mxu0 0.0
    %1157 = vmatpush1.xpose.msra.mxu0 0.0
    %1158 = vmatprep.subr.mxu0 0.0
    %1159 = vmatpush1.xpose.msra.mxu0 0.0
    %1160 = vmatprep.subr.mxu0 0.0
    %1161 = vmatpush1.xpose.msra.mxu0 0.0
    %1162 = vmatprep.subr.mxu0 0.0
    %1163 = vmatpush1.xpose.msra.mxu0 0.0
    %1164 = vmatprep.subr.mxu0 0.0
    %1165 = vmatpush1.xpose.msra.mxu0 0.0
    %1166 = vmatprep.subr.mxu0 0.0
    %1167 = vmatpush1.xpose.msra.mxu0 0.0
    %1168 = vmatprep.subr.mxu0 0.0
    %1169 = vmatpush1.xpose.msra.mxu0 0.0
    %1170 = vmatprep.subr.mxu0 0.0
    %1171 = vmatpush1.xpose.msra.mxu0 0.0
    %1172 = vmatprep.subr.mxu0 0.0
    %1173 = vmatpush1.xpose.msra.mxu0 0.0
    %1174 = vmatprep.subr.mxu0 0.0
    %1175 = vmatpush1.xpose.msra.mxu0 0.0
    %1176 = vmatprep.subr.mxu0 0.0
    %1177 = vmatpush1.xpose.msra.mxu0 0.0
    %1178 = vmatprep.subr.mxu0 0.0
    %1179 = vmatpush1.xpose.msra.mxu0 0.0
    %1180 = vmatprep.subr.mxu0 0.0
    %1181 = vmatpush1.xpose.msra.mxu0 0.0
    %1182 = vmatprep.subr.mxu0 0.0
    %1183 = vmatpush1.xpose.msra.mxu0 0.0
    %1184 = vmatprep.subr.mxu0 0.0
    %1185 = vmatpush1.xpose.msra.mxu0 0.0
    %1186 = vmatprep.subr.mxu0 0.0
    %1187 = vmatpush1.xpose.msra.mxu0 0.0
    %1188 = vmatprep.mubr.f32.mxu0 0.0
    %1189 = vmatmul.mubr.f32.gmra.mrb[0].mxu0 %v1120
    %v1190 = vpop.f32.mrb[0].mxu0
    %v1191 = vadd.f32 0.0, %v1190
    %v1192 = vpop.f32.mrb[0].mxu0
    %1193 = vdwg.mxu0
    %1195 = vrot.lane.b32.xlu0 %v651, 120
    %v1196 = vpop.permute.xlu0 %1195
    %v1197 = vsel %vm657, %v651, 0
    %v1199 = vsel %vm657, %v1196, 0
    %1201 = vmatprep.subr.mxu0 0.0
    %1202 = vmatpush1.xpose.msra.mxu0 %v1199
    %1203 = vmatprep.subr.mxu0 0.0
    %1204 = vmatpush1.xpose.msra.mxu0 0.0
    %1205 = vmatprep.subr.mxu0 0.0
    %1206 = vmatpush1.xpose.msra.mxu0 0.0
    %1207 = vmatprep.subr.mxu0 0.0
    %1208 = vmatpush1.xpose.msra.mxu0 0.0
    %1209 = vmatprep.subr.mxu0 0.0
    %1210 = vmatpush1.xpose.msra.mxu0 0.0
    %1211 = vmatprep.subr.mxu0 0.0
    %1212 = vmatpush1.xpose.msra.mxu0 0.0
    %1213 = vmatprep.subr.mxu0 0.0
    %1214 = vmatpush1.xpose.msra.mxu0 0.0
    %1215 = vmatprep.subr.mxu0 0.0
    %1216 = vmatpush1.xpose.msra.mxu0 0.0
    %1217 = vmatprep.subr.mxu0 0.0
    %1218 = vmatpush1.xpose.msra.mxu0 0.0
    %1219 = vmatprep.subr.mxu0 0.0
    %1220 = vmatpush1.xpose.msra.mxu0 0.0
    %1221 = vmatprep.subr.mxu0 0.0
    %1222 = vmatpush1.xpose.msra.mxu0 0.0
    %1223 = vmatprep.subr.mxu0 0.0
    %1224 = vmatpush1.xpose.msra.mxu0 0.0
    %1225 = vmatprep.subr.mxu0 0.0
    %1226 = vmatpush1.xpose.msra.mxu0 0.0
    %1227 = vmatprep.subr.mxu0 0.0
    %1228 = vmatpush1.xpose.msra.mxu0 0.0
    %1229 = vmatprep.subr.mxu0 0.0
    %1230 = vmatpush1.xpose.msra.mxu0 0.0
    %1231 = vmatprep.subr.mxu0 0.0
    %1232 = vmatpush1.xpose.msra.mxu0 0.0
    %1233 = vmatprep.subr.mxu0 0.0
    %1234 = vmatpush1.xpose.msra.mxu0 0.0
    %1235 = vmatprep.subr.mxu0 0.0
    %1236 = vmatpush1.xpose.msra.mxu0 0.0
    %1237 = vmatprep.subr.mxu0 0.0
    %1238 = vmatpush1.xpose.msra.mxu0 0.0
    %1239 = vmatprep.subr.mxu0 0.0
    %1240 = vmatpush1.xpose.msra.mxu0 0.0
    %1241 = vmatprep.subr.mxu0 0.0
    %1242 = vmatpush1.xpose.msra.mxu0 0.0
    %1243 = vmatprep.subr.mxu0 0.0
    %1244 = vmatpush1.xpose.msra.mxu0 0.0
    %1245 = vmatprep.subr.mxu0 0.0
    %1246 = vmatpush1.xpose.msra.mxu0 0.0
    %1247 = vmatprep.subr.mxu0 0.0
    %1248 = vmatpush1.xpose.msra.mxu0 0.0
    %1249 = vmatprep.subr.mxu0 0.0
    %1250 = vmatpush1.xpose.msra.mxu0 0.0
    %1251 = vmatprep.subr.mxu0 0.0
    %1252 = vmatpush1.xpose.msra.mxu0 0.0
    %1253 = vmatprep.subr.mxu0 0.0
    %1254 = vmatpush1.xpose.msra.mxu0 0.0
    %1255 = vmatprep.subr.mxu0 0.0
    %1256 = vmatpush1.xpose.msra.mxu0 0.0
    %1257 = vmatprep.subr.mxu0 0.0
    %1258 = vmatpush1.xpose.msra.mxu0 0.0
    %1259 = vmatprep.subr.mxu0 0.0
    %1260 = vmatpush1.xpose.msra.mxu0 0.0
    %1261 = vmatprep.subr.mxu0 0.0
    %1262 = vmatpush1.xpose.msra.mxu0 0.0
    %1263 = vmatprep.subr.mxu0 0.0
    %1264 = vmatpush1.xpose.msra.mxu0 0.0
    %1265 = vmatprep.mubr.f32.mxu0 0.0
    %1266 = vmatmul.mubr.f32.gmra.mrb[0].mxu0 %v1197
    %v1267 = vpop.f32.mrb[0].mxu0
    %v1268 = vadd.f32 0.0, %v1267
    %v1269 = vpop.f32.mrb[0].mxu0
    %1270 = vdwg.mxu0
    %v1271 = vsel %vm657, %v729, -inf
    %1272 = vmax.xlane.f32.xlu0 %v1271
    %v1273 = vpop.xlane.xlu0 %1272
    %v1274 = vsel %vm657, %v806, -inf
    %1275 = vmax.xlane.f32.xlu0 %v1274
    %v1276 = vpop.xlane.xlu0 %1275
    %v1277 = vsel %vm657, %v883, -inf
    %1278 = vmax.xlane.f32.xlu0 %v1277
    %v1279 = vpop.xlane.xlu0 %1278
    %v1280 = vsel %vm657, %v960, -inf
    %1281 = vmax.xlane.f32.xlu0 %v1280
    %v1282 = vpop.xlane.xlu0 %1281
    %v1283 = vsel %vm657, %v1037, -inf
    %1284 = vmax.xlane.f32.xlu0 %v1283
    %v1285 = vpop.xlane.xlu0 %1284
    %v1286 = vsel %vm657, %v1114, -inf
    %1287 = vmax.xlane.f32.xlu0 %v1286
    %v1288 = vpop.xlane.xlu0 %1287
    %v1289 = vsel %vm657, %v1191, -inf
    %1290 = vmax.xlane.f32.xlu0 %v1289
    %v1291 = vpop.xlane.xlu0 %1290
    %v1292 = vsel %vm657, %v1268, -inf
    %1293 = vmax.xlane.f32.xlu0 %v1292
    %v1294 = vpop.xlane.xlu0 %1293
    %v1295 = vsub.f32 %v729, %v1273
    %v1296 = vsub.f32 %v806, %v1276
    %v1297 = vsub.f32 %v883, %v1279
    %v1298 = vsub.f32 %v960, %v1282
    %v1299 = vsub.f32 %v1037, %v1285
    %v1300 = vsub.f32 %v1114, %v1288
    %v1301 = vsub.f32 %v1191, %v1291
    %v1302 = vsub.f32 %v1268, %v1294
    %v1303 = vmul.f32 %v1295, 1.442695
    %v1304 = vpow.pop %v1303
    %v1305 = vmul.f32 %v1296, 1.442695
    %v1306 = vpow.pop %v1305
    %v1307 = vmul.f32 %v1297, 1.442695
    %v1308 = vpow.pop %v1307
    %v1309 = vmul.f32 %v1298, 1.442695
    %v1310 = vpow.pop %v1309
    %v1311 = vmul.f32 %v1299, 1.442695
    %v1312 = vpow.pop %v1311
    %v1313 = vmul.f32 %v1300, 1.442695
    %v1314 = vpow.pop %v1313
    %v1315 = vmul.f32 %v1301, 1.442695
    %v1316 = vpow.pop %v1315
    %v1317 = vmul.f32 %v1302, 1.442695
    %v1318 = vpow.pop %v1317
    %v1319 = vsel %vm657, %v1304, 0.0
    %1320 = vadd.xlane.f32.xlu0 %v1319
    %v1321 = vpop.xlane.xlu0 %1320
    %v1322 = vsel %vm657, %v1306, 0.0
    %1323 = vadd.xlane.f32.xlu0 %v1322
    %v1324 = vpop.xlane.xlu0 %1323
    %v1325 = vsel %vm657, %v1308, 0.0
    %1326 = vadd.xlane.f32.xlu0 %v1325
    %v1327 = vpop.xlane.xlu0 %1326
    %v1328 = vsel %vm657, %v1310, 0.0
    %1329 = vadd.xlane.f32.xlu0 %v1328
    %v1330 = vpop.xlane.xlu0 %1329
    %v1331 = vsel %vm657, %v1312, 0.0
    %1332 = vadd.xlane.f32.xlu0 %v1331
    %v1333 = vpop.xlane.xlu0 %1332
    %v1334 = vsel %vm657, %v1314, 0.0
    %1335 = vadd.xlane.f32.xlu0 %v1334
    %v1336 = vpop.xlane.xlu0 %1335
    %v1337 = vsel %vm657, %v1316, 0.0
    %1338 = vadd.xlane.f32.xlu0 %v1337
    %v1339 = vpop.xlane.xlu0 %1338
    %v1340 = vsel %vm657, %v1318, 0.0
    %1341 = vadd.xlane.f32.xlu0 %v1340
    %v1342 = vpop.xlane.xlu0 %1341
    %v1343 = vrcp.pop %v1321
    %v1344 = vrcp.pop %v1324
    %v1345 = vrcp.pop %v1327
    %v1346 = vrcp.pop %v1330
    %v1347 = vrcp.pop %v1333
    %v1348 = vrcp.pop %v1336
    %v1349 = vrcp.pop %v1339
    %v1350 = vrcp.pop %v1342
    %v1351 = vmul.f32 %v1304, %v1343
    %v1352 = vmul.f32 %v1306, %v1344
    %v1353 = vmul.f32 %v1308, %v1345
    %v1354 = vmul.f32 %v1310, %v1346
    %v1355 = vmul.f32 %v1312, %v1347
    %v1356 = vmul.f32 %v1314, %v1348
    %v1357 = vmul.f32 %v1316, %v1349
    %v1358 = vmul.f32 %v1318, %v1350
    %1359 = vrot.lane.b32.xlu0 %v158, 112
    %v1360 = vpop.permute.xlu0 %1359
    %v1363 = vsel %vm657, %v1351, 0
    %1365 = vmatprep.subr.mxu0 0.0
    %1366 = vmatpush1.msra.mxu0 %v1360
    %1367 = vmatprep.subr.mxu0 0.0
    %1368 = vmatpush1.msra.mxu0 0.0
    %1369 = vmatprep.subr.mxu0 0.0
    %1370 = vmatpush1.msra.mxu0 0.0
    %1371 = vmatprep.subr.mxu0 0.0
    %1372 = vmatpush1.msra.mxu0 0.0
    %1373 = vmatprep.subr.mxu0 0.0
    %1374 = vmatpush1.msra.mxu0 0.0
    %1375 = vmatprep.subr.mxu0 0.0
    %1376 = vmatpush1.msra.mxu0 0.0
    %1377 = vmatprep.subr.mxu0 0.0
    %1378 = vmatpush1.msra.mxu0 0.0
    %1379 = vmatprep.subr.mxu0 0.0
    %1380 = vmatpush1.msra.mxu0 0.0
    %1381 = vmatprep.subr.mxu0 0.0
    %1382 = vmatpush1.msra.mxu0 0.0
    %1383 = vmatprep.subr.mxu0 0.0
    %1384 = vmatpush1.msra.mxu0 0.0
    %1385 = vmatprep.subr.mxu0 0.0
    %1386 = vmatpush1.msra.mxu0 0.0
    %1387 = vmatprep.subr.mxu0 0.0
    %1388 = vmatpush1.msra.mxu0 0.0
    %1389 = vmatprep.subr.mxu0 0.0
    %1390 = vmatpush1.msra.mxu0 0.0
    %1391 = vmatprep.subr.mxu0 0.0
    %1392 = vmatpush1.msra.mxu0 0.0
    %1393 = vmatprep.subr.mxu0 0.0
    %1394 = vmatpush1.msra.mxu0 0.0
    %1395 = vmatprep.subr.mxu0 0.0
    %1396 = vmatpush1.msra.mxu0 0.0
    %1397 = vmatprep.subr.mxu0 0.0
    %1398 = vmatpush1.msra.mxu0 0.0
    %1399 = vmatprep.subr.mxu0 0.0
    %1400 = vmatpush1.msra.mxu0 0.0
    %1401 = vmatprep.subr.mxu0 0.0
    %1402 = vmatpush1.msra.mxu0 0.0
    %1403 = vmatprep.subr.mxu0 0.0
    %1404 = vmatpush1.msra.mxu0 0.0
    %1405 = vmatprep.subr.mxu0 0.0
    %1406 = vmatpush1.msra.mxu0 0.0
    %1407 = vmatprep.subr.mxu0 0.0
    %1408 = vmatpush1.msra.mxu0 0.0
    %1409 = vmatprep.subr.mxu0 0.0
    %1410 = vmatpush1.msra.mxu0 0.0
    %1411 = vmatprep.subr.mxu0 0.0
    %1412 = vmatpush1.msra.mxu0 0.0
    %1413 = vmatprep.subr.mxu0 0.0
    %1414 = vmatpush1.msra.mxu0 0.0
    %1415 = vmatprep.subr.mxu0 0.0
    %1416 = vmatpush1.msra.mxu0 0.0
    %1417 = vmatprep.subr.mxu0 0.0
    %1418 = vmatpush1.msra.mxu0 0.0
    %1419 = vmatprep.subr.mxu0 0.0
    %1420 = vmatpush1.msra.mxu0 0.0
    %1421 = vmatprep.subr.mxu0 0.0
    %1422 = vmatpush1.msra.mxu0 0.0
    %1423 = vmatprep.subr.mxu0 0.0
    %1424 = vmatpush1.msra.mxu0 0.0
    %1425 = vmatprep.subr.mxu0 0.0
    %1426 = vmatpush1.msra.mxu0 0.0
    %1427 = vmatprep.subr.mxu0 0.0
    %1428 = vmatpush1.msra.mxu0 0.0
    %1429 = vmatprep.mubr.f32.mxu0 0.0
    %1430 = vmatmul.mubr.f32.gmra.mrb[0].mxu0 %v1363
    %v1431 = vpop.f32.mrb[0].mxu0
    %v1432 = vadd.f32 0.0, %v1431
    %v1433 = vpop.f32.mrb[0].mxu0
    %1434 = vdwg.mxu0
    %1435 = vrot.lane.b32.xlu0 %v228, 112
    %v1436 = vpop.permute.xlu0 %1435
    %v1439 = vsel %vm657, %v1352, 0
    %1441 = vmatprep.subr.mxu0 0.0
    %1442 = vmatpush1.msra.mxu0 %v1436
    %1443 = vmatprep.subr.mxu0 0.0
    %1444 = vmatpush1.msra.mxu0 0.0
    %1445 = vmatprep.subr.mxu0 0.0
    %1446 = vmatpush1.msra.mxu0 0.0
    %1447 = vmatprep.subr.mxu0 0.0
    %1448 = vmatpush1.msra.mxu0 0.0
    %1449 = vmatprep.subr.mxu0 0.0
    %1450 = vmatpush1.msra.mxu0 0.0
    %1451 = vmatprep.subr.mxu0 0.0
    %1452 = vmatpush1.msra.mxu0 0.0
    %1453 = vmatprep.subr.mxu0 0.0
    %1454 = vmatpush1.msra.mxu0 0.0
    %1455 = vmatprep.subr.mxu0 0.0
    %1456 = vmatpush1.msra.mxu0 0.0
    %1457 = vmatprep.subr.mxu0 0.0
    %1458 = vmatpush1.msra.mxu0 0.0
    %1459 = vmatprep.subr.mxu0 0.0
    %1460 = vmatpush1.msra.mxu0 0.0
    %1461 = vmatprep.subr.mxu0 0.0
    %1462 = vmatpush1.msra.mxu0 0.0
    %1463 = vmatprep.subr.mxu0 0.0
    %1464 = vmatpush1.msra.mxu0 0.0
    %1465 = vmatprep.subr.mxu0 0.0
    %1466 = vmatpush1.msra.mxu0 0.0
    %1467 = vmatprep.subr.mxu0 0.0
    %1468 = vmatpush1.msra.mxu0 0.0
    %1469 = vmatprep.subr.mxu0 0.0
    %1470 = vmatpush1.msra.mxu0 0.0
    %1471 = vmatprep.subr.mxu0 0.0
    %1472 = vmatpush1.msra.mxu0 0.0
    %1473 = vmatprep.subr.mxu0 0.0
    %1474 = vmatpush1.msra.mxu0 0.0
    %1475 = vmatprep.subr.mxu0 0.0
    %1476 = vmatpush1.msra.mxu0 0.0
    %1477 = vmatprep.subr.mxu0 0.0
    %1478 = vmatpush1.msra.mxu0 0.0
    %1479 = vmatprep.subr.mxu0 0.0
    %1480 = vmatpush1.msra.mxu0 0.0
    %1481 = vmatprep.subr.mxu0 0.0
    %1482 = vmatpush1.msra.mxu0 0.0
    %1483 = vmatprep.subr.mxu0 0.0
    %1484 = vmatpush1.msra.mxu0 0.0
    %1485 = vmatprep.subr.mxu0 0.0
    %1486 = vmatpush1.msra.mxu0 0.0
    %1487 = vmatprep.subr.mxu0 0.0
    %1488 = vmatpush1.msra.mxu0 0.0
    %1489 = vmatprep.subr.mxu0 0.0
    %1490 = vmatpush1.msra.mxu0 0.0
    %1491 = vmatprep.subr.mxu0 0.0
    %1492 = vmatpush1.msra.mxu0 0.0
    %1493 = vmatprep.subr.mxu0 0.0
    %1494 = vmatpush1.msra.mxu0 0.0
    %1495 = vmatprep.subr.mxu0 0.0
    %1496 = vmatpush1.msra.mxu0 0.0
    %1497 = vmatprep.subr.mxu0 0.0
    %1498 = vmatpush1.msra.mxu0 0.0
    %1499 = vmatprep.subr.mxu0 0.0
    %1500 = vmatpush1.msra.mxu0 0.0
    %1501 = vmatprep.subr.mxu0 0.0
    %1502 = vmatpush1.msra.mxu0 0.0
    %1503 = vmatprep.subr.mxu0 0.0
    %1504 = vmatpush1.msra.mxu0 0.0
    %1505 = vmatprep.mubr.f32.mxu0 0.0
    %1506 = vmatmul.mubr.f32.gmra.mrb[0].mxu0 %v1439
    %v1507 = vpop.f32.mrb[0].mxu0
    %v1508 = vadd.f32 0.0, %v1507
    %v1509 = vpop.f32.mrb[0].mxu0
    %1510 = vdwg.mxu0
    %1511 = vrot.lane.b32.xlu0 %v298, 112
    %v1512 = vpop.permute.xlu0 %1511
    %v1515 = vsel %vm657, %v1353, 0
    %1517 = vmatprep.subr.mxu0 0.0
    %1518 = vmatpush1.msra.mxu0 %v1512
    %1519 = vmatprep.subr.mxu0 0.0
    %1520 = vmatpush1.msra.mxu0 0.0
    %1521 = vmatprep.subr.mxu0 0.0
    %1522 = vmatpush1.msra.mxu0 0.0
    %1523 = vmatprep.subr.mxu0 0.0
    %1524 = vmatpush1.msra.mxu0 0.0
    %1525 = vmatprep.subr.mxu0 0.0
    %1526 = vmatpush1.msra.mxu0 0.0
    %1527 = vmatprep.subr.mxu0 0.0
    %1528 = vmatpush1.msra.mxu0 0.0
    %1529 = vmatprep.subr.mxu0 0.0
    %1530 = vmatpush1.msra.mxu0 0.0
    %1531 = vmatprep.subr.mxu0 0.0
    %1532 = vmatpush1.msra.mxu0 0.0
    %1533 = vmatprep.subr.mxu0 0.0
    %1534 = vmatpush1.msra.mxu0 0.0
    %1535 = vmatprep.subr.mxu0 0.0
    %1536 = vmatpush1.msra.mxu0 0.0
    %1537 = vmatprep.subr.mxu0 0.0
    %1538 = vmatpush1.msra.mxu0 0.0
    %1539 = vmatprep.subr.mxu0 0.0
    %1540 = vmatpush1.msra.mxu0 0.0
    %1541 = vmatprep.subr.mxu0 0.0
    %1542 = vmatpush1.msra.mxu0 0.0
    %1543 = vmatprep.subr.mxu0 0.0
    %1544 = vmatpush1.msra.mxu0 0.0
    %1545 = vmatprep.subr.mxu0 0.0
    %1546 = vmatpush1.msra.mxu0 0.0
    %1547 = vmatprep.subr.mxu0 0.0
    %1548 = vmatpush1.msra.mxu0 0.0
    %1549 = vmatprep.subr.mxu0 0.0
    %1550 = vmatpush1.msra.mxu0 0.0
    %1551 = vmatprep.subr.mxu0 0.0
    %1552 = vmatpush1.msra.mxu0 0.0
    %1553 = vmatprep.subr.mxu0 0.0
    %1554 = vmatpush1.msra.mxu0 0.0
    %1555 = vmatprep.subr.mxu0 0.0
    %1556 = vmatpush1.msra.mxu0 0.0
    %1557 = vmatprep.subr.mxu0 0.0
    %1558 = vmatpush1.msra.mxu0 0.0
    %1559 = vmatprep.subr.mxu0 0.0
    %1560 = vmatpush1.msra.mxu0 0.0
    %1561 = vmatprep.subr.mxu0 0.0
    %1562 = vmatpush1.msra.mxu0 0.0
    %1563 = vmatprep.subr.mxu0 0.0
    %1564 = vmatpush1.msra.mxu0 0.0
    %1565 = vmatprep.subr.mxu0 0.0
    %1566 = vmatpush1.msra.mxu0 0.0
    %1567 = vmatprep.subr.mxu0 0.0
    %1568 = vmatpush1.msra.mxu0 0.0
    %1569 = vmatprep.subr.mxu0 0.0
    %1570 = vmatpush1.msra.mxu0 0.0
    %1571 = vmatprep.subr.mxu0 0.0
    %1572 = vmatpush1.msra.mxu0 0.0
    %1573 = vmatprep.subr.mxu0 0.0
    %1574 = vmatpush1.msra.mxu0 0.0
    %1575 = vmatprep.subr.mxu0 0.0
    %1576 = vmatpush1.msra.mxu0 0.0
    %1577 = vmatprep.subr.mxu0 0.0
    %1578 = vmatpush1.msra.mxu0 0.0
    %1579 = vmatprep.subr.mxu0 0.0
    %1580 = vmatpush1.msra.mxu0 0.0
    %1581 = vmatprep.mubr.f32.mxu0 0.0
    %1582 = vmatmul.mubr.f32.gmra.mrb[0].mxu0 %v1515
    %v1583 = vpop.f32.mrb[0].mxu0
    %v1584 = vadd.f32 0.0, %v1583
    %v1585 = vpop.f32.mrb[0].mxu0
    %1586 = vdwg.mxu0
    %1587 = vrot.lane.b32.xlu0 %v368, 112
    %v1588 = vpop.permute.xlu0 %1587
    %v1591 = vsel %vm657, %v1354, 0
    %1593 = vmatprep.subr.mxu0 0.0
    %1594 = vmatpush1.msra.mxu0 %v1588
    %1595 = vmatprep.subr.mxu0 0.0
    %1596 = vmatpush1.msra.mxu0 0.0
    %1597 = vmatprep.subr.mxu0 0.0
    %1598 = vmatpush1.msra.mxu0 0.0
    %1599 = vmatprep.subr.mxu0 0.0
    %1600 = vmatpush1.msra.mxu0 0.0
    %1601 = vmatprep.subr.mxu0 0.0
    %1602 = vmatpush1.msra.mxu0 0.0
    %1603 = vmatprep.subr.mxu0 0.0
    %1604 = vmatpush1.msra.mxu0 0.0
    %1605 = vmatprep.subr.mxu0 0.0
    %1606 = vmatpush1.msra.mxu0 0.0
    %1607 = vmatprep.subr.mxu0 0.0
    %1608 = vmatpush1.msra.mxu0 0.0
    %1609 = vmatprep.subr.mxu0 0.0
    %1610 = vmatpush1.msra.mxu0 0.0
    %1611 = vmatprep.subr.mxu0 0.0
    %1612 = vmatpush1.msra.mxu0 0.0
    %1613 = vmatprep.subr.mxu0 0.0
    %1614 = vmatpush1.msra.mxu0 0.0
    %1615 = vmatprep.subr.mxu0 0.0
    %1616 = vmatpush1.msra.mxu0 0.0
    %1617 = vmatprep.subr.mxu0 0.0
    %1618 = vmatpush1.msra.mxu0 0.0
    %1619 = vmatprep.subr.mxu0 0.0
    %1620 = vmatpush1.msra.mxu0 0.0
    %1621 = vmatprep.subr.mxu0 0.0
    %1622 = vmatpush1.msra.mxu0 0.0
    %1623 = vmatprep.subr.mxu0 0.0
    %1624 = vmatpush1.msra.mxu0 0.0
    %1625 = vmatprep.subr.mxu0 0.0
    %1626 = vmatpush1.msra.mxu0 0.0
    %1627 = vmatprep.subr.mxu0 0.0
    %1628 = vmatpush1.msra.mxu0 0.0
    %1629 = vmatprep.subr.mxu0 0.0
    %1630 = vmatpush1.msra.mxu0 0.0
    %1631 = vmatprep.subr.mxu0 0.0
    %1632 = vmatpush1.msra.mxu0 0.0
    %1633 = vmatprep.subr.mxu0 0.0
    %1634 = vmatpush1.msra.mxu0 0.0
    %1635 = vmatprep.subr.mxu0 0.0
    %1636 = vmatpush1.msra.mxu0 0.0
    %1637 = vmatprep.subr.mxu0 0.0
    %1638 = vmatpush1.msra.mxu0 0.0
    %1639 = vmatprep.subr.mxu0 0.0
    %1640 = vmatpush1.msra.mxu0 0.0
    %1641 = vmatprep.subr.mxu0 0.0
    %1642 = vmatpush1.msra.mxu0 0.0
    %1643 = vmatprep.subr.mxu0 0.0
    %1644 = vmatpush1.msra.mxu0 0.0
    %1645 = vmatprep.subr.mxu0 0.0
    %1646 = vmatpush1.msra.mxu0 0.0
    %1647 = vmatprep.subr.mxu0 0.0
    %1648 = vmatpush1.msra.mxu0 0.0
    %1649 = vmatprep.subr.mxu0 0.0
    %1650 = vmatpush1.msra.mxu0 0.0
    %1651 = vmatprep.subr.mxu0 0.0
    %1652 = vmatpush1.msra.mxu0 0.0
    %1653 = vmatprep.subr.mxu0 0.0
    %1654 = vmatpush1.msra.mxu0 0.0
    %1655 = vmatprep.subr.mxu0 0.0
    %1656 = vmatpush1.msra.mxu0 0.0
    %1657 = vmatprep.mubr.f32.mxu0 0.0
    %1658 = vmatmul.mubr.f32.gmra.mrb[0].mxu0 %v1591
    %v1659 = vpop.f32.mrb[0].mxu0
    %v1660 = vadd.f32 0.0, %v1659
    %v1661 = vpop.f32.mrb[0].mxu0
    %1662 = vdwg.mxu0
    %1663 = vrot.lane.b32.xlu0 %v441, 112
    %v1664 = vpop.permute.xlu0 %1663
    %v1667 = vsel %vm657, %v1355, 0
    %1669 = vmatprep.subr.mxu0 0.0
    %1670 = vmatpush1.msra.mxu0 %v1664
    %1671 = vmatprep.subr.mxu0 0.0
    %1672 = vmatpush1.msra.mxu0 0.0
    %1673 = vmatprep.subr.mxu0 0.0
    %1674 = vmatpush1.msra.mxu0 0.0
    %1675 = vmatprep.subr.mxu0 0.0
    %1676 = vmatpush1.msra.mxu0 0.0
    %1677 = vmatprep.subr.mxu0 0.0
    %1678 = vmatpush1.msra.mxu0 0.0
    %1679 = vmatprep.subr.mxu0 0.0
    %1680 = vmatpush1.msra.mxu0 0.0
    %1681 = vmatprep.subr.mxu0 0.0
    %1682 = vmatpush1.msra.mxu0 0.0
    %1683 = vmatprep.subr.mxu0 0.0
    %1684 = vmatpush1.msra.mxu0 0.0
    %1685 = vmatprep.subr.mxu0 0.0
    %1686 = vmatpush1.msra.mxu0 0.0
    %1687 = vmatprep.subr.mxu0 0.0
    %1688 = vmatpush1.msra.mxu0 0.0
    %1689 = vmatprep.subr.mxu0 0.0
    %1690 = vmatpush1.msra.mxu0 0.0
    %1691 = vmatprep.subr.mxu0 0.0
    %1692 = vmatpush1.msra.mxu0 0.0
    %1693 = vmatprep.subr.mxu0 0.0
    %1694 = vmatpush1.msra.mxu0 0.0
    %1695 = vmatprep.subr.mxu0 0.0
    %1696 = vmatpush1.msra.mxu0 0.0
    %1697 = vmatprep.subr.mxu0 0.0
    %1698 = vmatpush1.msra.mxu0 0.0
    %1699 = vmatprep.subr.mxu0 0.0
    %1700 = vmatpush1.msra.mxu0 0.0
    %1701 = vmatprep.subr.mxu0 0.0
    %1702 = vmatpush1.msra.mxu0 0.0
    %1703 = vmatprep.subr.mxu0 0.0
    %1704 = vmatpush1.msra.mxu0 0.0
    %1705 = vmatprep.subr.mxu0 0.0
    %1706 = vmatpush1.msra.mxu0 0.0
    %1707 = vmatprep.subr.mxu0 0.0
    %1708 = vmatpush1.msra.mxu0 0.0
    %1709 = vmatprep.subr.mxu0 0.0
    %1710 = vmatpush1.msra.mxu0 0.0
    %1711 = vmatprep.subr.mxu0 0.0
    %1712 = vmatpush1.msra.mxu0 0.0
    %1713 = vmatprep.subr.mxu0 0.0
    %1714 = vmatpush1.msra.mxu0 0.0
    %1715 = vmatprep.subr.mxu0 0.0
    %1716 = vmatpush1.msra.mxu0 0.0
    %1717 = vmatprep.subr.mxu0 0.0
    %1718 = vmatpush1.msra.mxu0 0.0
    %1719 = vmatprep.subr.mxu0 0.0
    %1720 = vmatpush1.msra.mxu0 0.0
    %1721 = vmatprep.subr.mxu0 0.0
    %1722 = vmatpush1.msra.mxu0 0.0
    %1723 = vmatprep.subr.mxu0 0.0
    %1724 = vmatpush1.msra.mxu0 0.0
    %1725 = vmatprep.subr.mxu0 0.0
    %1726 = vmatpush1.msra.mxu0 0.0
    %1727 = vmatprep.subr.mxu0 0.0
    %1728 = vmatpush1.msra.mxu0 0.0
    %1729 = vmatprep.subr.mxu0 0.0
    %1730 = vmatpush1.msra.mxu0 0.0
    %1731 = vmatprep.subr.mxu0 0.0
    %1732 = vmatpush1.msra.mxu0 0.0
    %1733 = vmatprep.mubr.f32.mxu0 0.0
    %1734 = vmatmul.mubr.f32.gmra.mrb[0].mxu0 %v1667
    %v1735 = vpop.f32.mrb[0].mxu0
    %v1736 = vadd.f32 0.0, %v1735
    %v1737 = vpop.f32.mrb[0].mxu0
    %1738 = vdwg.mxu0
    %1739 = vrot.lane.b32.xlu0 %v511, 112
    %v1740 = vpop.permute.xlu0 %1739
    %v1743 = vsel %vm657, %v1356, 0
    %1745 = vmatprep.subr.mxu0 0.0
    %1746 = vmatpush1.msra.mxu0 %v1740
    %1747 = vmatprep.subr.mxu0 0.0
    %1748 = vmatpush1.msra.mxu0 0.0
    %1749 = vmatprep.subr.mxu0 0.0
    %1750 = vmatpush1.msra.mxu0 0.0
    %1751 = vmatprep.subr.mxu0 0.0
    %1752 = vmatpush1.msra.mxu0 0.0
    %1753 = vmatprep.subr.mxu0 0.0
    %1754 = vmatpush1.msra.mxu0 0.0
    %1755 = vmatprep.subr.mxu0 0.0
    %1756 = vmatpush1.msra.mxu0 0.0
    %1757 = vmatprep.subr.mxu0 0.0
    %1758 = vmatpush1.msra.mxu0 0.0
    %1759 = vmatprep.subr.mxu0 0.0
    %1760 = vmatpush1.msra.mxu0 0.0
    %1761 = vmatprep.subr.mxu0 0.0
    %1762 = vmatpush1.msra.mxu0 0.0
    %1763 = vmatprep.subr.mxu0 0.0
    %1764 = vmatpush1.msra.mxu0 0.0
    %1765 = vmatprep.subr.mxu0 0.0
    %1766 = vmatpush1.msra.mxu0 0.0
    %1767 = vmatprep.subr.mxu0 0.0
    %1768 = vmatpush1.msra.mxu0 0.0
    %1769 = vmatprep.subr.mxu0 0.0
    %1770 = vmatpush1.msra.mxu0 0.0
    %1771 = vmatprep.subr.mxu0 0.0
    %1772 = vmatpush1.msra.mxu0 0.0
    %1773 = vmatprep.subr.mxu0 0.0
    %1774 = vmatpush1.msra.mxu0 0.0
    %1775 = vmatprep.subr.mxu0 0.0
    %1776 = vmatpush1.msra.mxu0 0.0
    %1777 = vmatprep.subr.mxu0 0.0
    %1778 = vmatpush1.msra.mxu0 0.0
    %1779 = vmatprep.subr.mxu0 0.0
    %1780 = vmatpush1.msra.mxu0 0.0
    %1781 = vmatprep.subr.mxu0 0.0
    %1782 = vmatpush1.msra.mxu0 0.0
    %1783 = vmatprep.subr.mxu0 0.0
    %1784 = vmatpush1.msra.mxu0 0.0
    %1785 = vmatprep.subr.mxu0 0.0
    %1786 = vmatpush1.msra.mxu0 0.0
    %1787 = vmatprep.subr.mxu0 0.0
    %1788 = vmatpush1.msra.mxu0 0.0
    %1789 = vmatprep.subr.mxu0 0.0
    %1790 = vmatpush1.msra.mxu0 0.0
    %1791 = vmatprep.subr.mxu0 0.0
    %1792 = vmatpush1.msra.mxu0 0.0
    %1793 = vmatprep.subr.mxu0 0.0
    %1794 = vmatpush1.msra.mxu0 0.0
    %1795 = vmatprep.subr.mxu0 0.0
    %1796 = vmatpush1.msra.mxu0 0.0
    %1797 = vmatprep.subr.mxu0 0.0
    %1798 = vmatpush1.msra.mxu0 0.0
    %1799 = vmatprep.subr.mxu0 0.0
    %1800 = vmatpush1.msra.mxu0 0.0
    %1801 = vmatprep.subr.mxu0 0.0
    %1802 = vmatpush1.msra.mxu0 0.0
    %1803 = vmatprep.subr.mxu0 0.0
    %1804 = vmatpush1.msra.mxu0 0.0
    %1805 = vmatprep.subr.mxu0 0.0
    %1806 = vmatpush1.msra.mxu0 0.0
    %1807 = vmatprep.subr.mxu0 0.0
    %1808 = vmatpush1.msra.mxu0 0.0
    %1809 = vmatprep.mubr.f32.mxu0 0.0
    %1810 = vmatmul.mubr.f32.gmra.mrb[0].mxu0 %v1743
    %v1811 = vpop.f32.mrb[0].mxu0
    %v1812 = vadd.f32 0.0, %v1811
    %v1813 = vpop.f32.mrb[0].mxu0
    %1814 = vdwg.mxu0
    %1815 = vrot.lane.b32.xlu0 %v581, 112
    %v1816 = vpop.permute.xlu0 %1815
    %v1819 = vsel %vm657, %v1357, 0
    %1821 = vmatprep.subr.mxu0 0.0
    %1822 = vmatpush1.msra.mxu0 %v1816
    %1823 = vmatprep.subr.mxu0 0.0
    %1824 = vmatpush1.msra.mxu0 0.0
    %1825 = vmatprep.subr.mxu0 0.0
    %1826 = vmatpush1.msra.mxu0 0.0
    %1827 = vmatprep.subr.mxu0 0.0
    %1828 = vmatpush1.msra.mxu0 0.0
    %1829 = vmatprep.subr.mxu0 0.0
    %1830 = vmatpush1.msra.mxu0 0.0
    %1831 = vmatprep.subr.mxu0 0.0
    %1832 = vmatpush1.msra.mxu0 0.0
    %1833 = vmatprep.subr.mxu0 0.0
    %1834 = vmatpush1.msra.mxu0 0.0
    %1835 = vmatprep.subr.mxu0 0.0
    %1836 = vmatpush1.msra.mxu0 0.0
    %1837 = vmatprep.subr.mxu0 0.0
    %1838 = vmatpush1.msra.mxu0 0.0
    %1839 = vmatprep.subr.mxu0 0.0
    %1840 = vmatpush1.msra.mxu0 0.0
    %1841 = vmatprep.subr.mxu0 0.0
    %1842 = vmatpush1.msra.mxu0 0.0
    %1843 = vmatprep.subr.mxu0 0.0
    %1844 = vmatpush1.msra.mxu0 0.0
    %1845 = vmatprep.subr.mxu0 0.0
    %1846 = vmatpush1.msra.mxu0 0.0
    %1847 = vmatprep.subr.mxu0 0.0
    %1848 = vmatpush1.msra.mxu0 0.0
    %1849 = vmatprep.subr.mxu0 0.0
    %1850 = vmatpush1.msra.mxu0 0.0
    %1851 = vmatprep.subr.mxu0 0.0
    %1852 = vmatpush1.msra.mxu0 0.0
    %1853 = vmatprep.subr.mxu0 0.0
    %1854 = vmatpush1.msra.mxu0 0.0
    %1855 = vmatprep.subr.mxu0 0.0
    %1856 = vmatpush1.msra.mxu0 0.0
    %1857 = vmatprep.subr.mxu0 0.0
    %1858 = vmatpush1.msra.mxu0 0.0
    %1859 = vmatprep.subr.mxu0 0.0
    %1860 = vmatpush1.msra.mxu0 0.0
    %1861 = vmatprep.subr.mxu0 0.0
    %1862 = vmatpush1.msra.mxu0 0.0
    %1863 = vmatprep.subr.mxu0 0.0
    %1864 = vmatpush1.msra.mxu0 0.0
    %1865 = vmatprep.subr.mxu0 0.0
    %1866 = vmatpush1.msra.mxu0 0.0
    %1867 = vmatprep.subr.mxu0 0.0
    %1868 = vmatpush1.msra.mxu0 0.0
    %1869 = vmatprep.subr.mxu0 0.0
    %1870 = vmatpush1.msra.mxu0 0.0
    %1871 = vmatprep.subr.mxu0 0.0
    %1872 = vmatpush1.msra.mxu0 0.0
    %1873 = vmatprep.subr.mxu0 0.0
    %1874 = vmatpush1.msra.mxu0 0.0
    %1875 = vmatprep.subr.mxu0 0.0
    %1876 = vmatpush1.msra.mxu0 0.0
    %1877 = vmatprep.subr.mxu0 0.0
    %1878 = vmatpush1.msra.mxu0 0.0
    %1879 = vmatprep.subr.mxu0 0.0
    %1880 = vmatpush1.msra.mxu0 0.0
    %1881 = vmatprep.subr.mxu0 0.0
    %1882 = vmatpush1.msra.mxu0 0.0
    %1883 = vmatprep.subr.mxu0 0.0
    %1884 = vmatpush1.msra.mxu0 0.0
    %1885 = vmatprep.mubr.f32.mxu0 0.0
    %1886 = vmatmul.mubr.f32.gmra.mrb[0].mxu0 %v1819
    %v1887 = vpop.f32.mrb[0].mxu0
    %v1888 = vadd.f32 0.0, %v1887
    %v1889 = vpop.f32.mrb[0].mxu0
    %1890 = vdwg.mxu0
    %1891 = vrot.lane.b32.xlu0 %v651, 112
    %v1892 = vpop.permute.xlu0 %1891
    %v1895 = vsel %vm657, %v1358, 0
    %1897 = vmatprep.subr.mxu0 0.0
    %1898 = vmatpush1.msra.mxu0 %v1892
    %1899 = vmatprep.subr.mxu0 0.0
    %1900 = vmatpush1.msra.mxu0 0.0
    %1901 = vmatprep.subr.mxu0 0.0
    %1902 = vmatpush1.msra.mxu0 0.0
    %1903 = vmatprep.subr.mxu0 0.0
    %1904 = vmatpush1.msra.mxu0 0.0
    %1905 = vmatprep.subr.mxu0 0.0
    %1906 = vmatpush1.msra.mxu0 0.0
    %1907 = vmatprep.subr.mxu0 0.0
    %1908 = vmatpush1.msra.mxu0 0.0
    %1909 = vmatprep.subr.mxu0 0.0
    %1910 = vmatpush1.msra.mxu0 0.0
    %1911 = vmatprep.subr.mxu0 0.0
    %1912 = vmatpush1.msra.mxu0 0.0
    %1913 = vmatprep.subr.mxu0 0.0
    %1914 = vmatpush1.msra.mxu0 0.0
    %1915 = vmatprep.subr.mxu0 0.0
    %1916 = vmatpush1.msra.mxu0 0.0
    %1917 = vmatprep.subr.mxu0 0.0
    %1918 = vmatpush1.msra.mxu0 0.0
    %1919 = vmatprep.subr.mxu0 0.0
    %1920 = vmatpush1.msra.mxu0 0.0
    %1921 = vmatprep.subr.mxu0 0.0
    %1922 = vmatpush1.msra.mxu0 0.0
    %1923 = vmatprep.subr.mxu0 0.0
    %1924 = vmatpush1.msra.mxu0 0.0
    %1925 = vmatprep.subr.mxu0 0.0
    %1926 = vmatpush1.msra.mxu0 0.0
    %1927 = vmatprep.subr.mxu0 0.0
    %1928 = vmatpush1.msra.mxu0 0.0
    %1929 = vmatprep.subr.mxu0 0.0
    %1930 = vmatpush1.msra.mxu0 0.0
    %1931 = vmatprep.subr.mxu0 0.0
    %1932 = vmatpush1.msra.mxu0 0.0
    %1933 = vmatprep.subr.mxu0 0.0
    %1934 = vmatpush1.msra.mxu0 0.0
    %1935 = vmatprep.subr.mxu0 0.0
    %1936 = vmatpush1.msra.mxu0 0.0
    %1937 = vmatprep.subr.mxu0 0.0
    %1938 = vmatpush1.msra.mxu0 0.0
    %1939 = vmatprep.subr.mxu0 0.0
    %1940 = vmatpush1.msra.mxu0 0.0
    %1941 = vmatprep.subr.mxu0 0.0
    %1942 = vmatpush1.msra.mxu0 0.0
    %1943 = vmatprep.subr.mxu0 0.0
    %1944 = vmatpush1.msra.mxu0 0.0
    %1945 = vmatprep.subr.mxu0 0.0
    %1946 = vmatpush1.msra.mxu0 0.0
    %1947 = vmatprep.subr.mxu0 0.0
    %1948 = vmatpush1.msra.mxu0 0.0
    %1949 = vmatprep.subr.mxu0 0.0
    %1950 = vmatpush1.msra.mxu0 0.0
    %1951 = vmatprep.subr.mxu0 0.0
    %1952 = vmatpush1.msra.mxu0 0.0
    %1953 = vmatprep.subr.mxu0 0.0
    %1954 = vmatpush1.msra.mxu0 0.0
    %1955 = vmatprep.subr.mxu0 0.0
    %1956 = vmatpush1.msra.mxu0 0.0
    %1957 = vmatprep.subr.mxu0 0.0
    %1958 = vmatpush1.msra.mxu0 0.0
    %1959 = vmatprep.subr.mxu0 0.0
    %1960 = vmatpush1.msra.mxu0 0.0
    %1961 = vmatprep.mubr.f32.mxu0 0.0
    %1962 = vmatmul.mubr.f32.gmra.mrb[0].mxu0 %v1895
    %v1963 = vpop.f32.mrb[0].mxu0
    %v1964 = vadd.f32 0.0, %v1963
    %v1965 = vpop.f32.mrb[0].mxu0
    %1966 = vdwg.mxu0
    %v1967 = vld [vmem:[%s2] sm:$0xff]
    %v1968 = vld [vmem:[%s2 + $0x8] sm:$0xff]
    %v1969 = vld [vmem:[%s2 + $0x10] sm:$0xff]
    %v1970 = vld [vmem:[%s2 + $0x18] sm:$0xff]
    %v1971 = vld [vmem:[%s2 + $0x20] sm:$0xff]
    %v1972 = vld [vmem:[%s2 + $0x28] sm:$0xff]
    %v1973 = vld [vmem:[%s2 + $0x30] sm:$0xff]
    %v1974 = vld [vmem:[%s2 + $0x38] sm:$0xff]
    %v1976 = vsel %vm657, %v1432, 0
    %1978 = vmatprep.subr.mxu0 0.0
    %1979 = vmatpush1.msra.mxu0 %v1967
    %1980 = vmatprep.subr.mxu0 0.0
    %1981 = vmatpush1.msra.mxu0 0.0
    %1982 = vmatprep.subr.mxu0 0.0
    %1983 = vmatpush1.msra.mxu0 0.0
    %1984 = vmatprep.subr.mxu0 0.0
    %1985 = vmatpush1.msra.mxu0 0.0
    %1986 = vmatprep.subr.mxu0 0.0
    %1987 = vmatpush1.msra.mxu0 0.0
    %1988 = vmatprep.subr.mxu0 0.0
    %1989 = vmatpush1.msra.mxu0 0.0
    %1990 = vmatprep.subr.mxu0 0.0
    %1991 = vmatpush1.msra.mxu0 0.0
    %1992 = vmatprep.subr.mxu0 0.0
    %1993 = vmatpush1.msra.mxu0 0.0
    %1994 = vmatprep.subr.mxu0 0.0
    %1995 = vmatpush1.msra.mxu0 0.0
    %1996 = vmatprep.subr.mxu0 0.0
    %1997 = vmatpush1.msra.mxu0 0.0
    %1998 = vmatprep.subr.mxu0 0.0
    %1999 = vmatpush1.msra.mxu0 0.0
    %2000 = vmatprep.subr.mxu0 0.0
    %2001 = vmatpush1.msra.mxu0 0.0
    %2002 = vmatprep.subr.mxu0 0.0
    %2003 = vmatpush1.msra.mxu0 0.0
    %2004 = vmatprep.subr.mxu0 0.0
    %2005 = vmatpush1.msra.mxu0 0.0
    %2006 = vmatprep.subr.mxu0 0.0
    %2007 = vmatpush1.msra.mxu0 0.0
    %2008 = vmatprep.subr.mxu0 0.0
    %2009 = vmatpush1.msra.mxu0 0.0
    %2010 = vmatprep.subr.mxu0 0.0
    %2011 = vmatpush1.msra.mxu0 0.0
    %2012 = vmatprep.subr.mxu0 0.0
    %2013 = vmatpush1.msra.mxu0 0.0
    %2014 = vmatprep.subr.mxu0 0.0
    %2015 = vmatpush1.msra.mxu0 0.0
    %2016 = vmatprep.subr.mxu0 0.0
    %2017 = vmatpush1.msra.mxu0 0.0
    %2018 = vmatprep.subr.mxu0 0.0
    %2019 = vmatpush1.msra.mxu0 0.0
    %2020 = vmatprep.subr.mxu0 0.0
    %2021 = vmatpush1.msra.mxu0 0.0
    %2022 = vmatprep.subr.mxu0 0.0
    %2023 = vmatpush1.msra.mxu0 0.0
    %2024 = vmatprep.subr.mxu0 0.0
    %2025 = vmatpush1.msra.mxu0 0.0
    %2026 = vmatprep.subr.mxu0 0.0
    %2027 = vmatpush1.msra.mxu0 0.0
    %2028 = vmatprep.subr.mxu0 0.0
    %2029 = vmatpush1.msra.mxu0 0.0
    %2030 = vmatprep.subr.mxu0 0.0
    %2031 = vmatpush1.msra.mxu0 0.0
    %2032 = vmatprep.subr.mxu0 0.0
    %2033 = vmatpush1.msra.mxu0 0.0
    %2034 = vmatprep.subr.mxu0 0.0
    %2035 = vmatpush1.msra.mxu0 0.0
    %2036 = vmatprep.subr.mxu0 0.0
    %2037 = vmatpush1.msra.mxu0 0.0
    %2038 = vmatprep.subr.mxu0 0.0
    %2039 = vmatpush1.msra.mxu0 0.0
    %2040 = vmatprep.subr.mxu0 0.0
    %2041 = vmatpush1.msra.mxu0 0.0
    %2042 = vmatprep.mubr.f32.mxu0 0.0
    %2043 = vmatmul.mubr.f32.gmra.mrb[0].mxu0 %v1976
    %v2044 = vpop.f32.mrb[0].mxu0
    %v2045 = vadd.f32 0.0, %v2044
    %v2046 = vpop.f32.mrb[0].mxu0
    %2047 = vdwg.mxu0
    %v2049 = vsel %vm657, %v1508, 0
    %2051 = vmatprep.subr.mxu0 0.0
    %2052 = vmatpush1.msra.mxu0 %v1968
    %2053 = vmatprep.subr.mxu0 0.0
    %2054 = vmatpush1.msra.mxu0 0.0
    %2055 = vmatprep.subr.mxu0 0.0
    %2056 = vmatpush1.msra.mxu0 0.0
    %2057 = vmatprep.subr.mxu0 0.0
    %2058 = vmatpush1.msra.mxu0 0.0
    %2059 = vmatprep.subr.mxu0 0.0
    %2060 = vmatpush1.msra.mxu0 0.0
    %2061 = vmatprep.subr.mxu0 0.0
    %2062 = vmatpush1.msra.mxu0 0.0
    %2063 = vmatprep.subr.mxu0 0.0
    %2064 = vmatpush1.msra.mxu0 0.0
    %2065 = vmatprep.subr.mxu0 0.0
    %2066 = vmatpush1.msra.mxu0 0.0
    %2067 = vmatprep.subr.mxu0 0.0
    %2068 = vmatpush1.msra.mxu0 0.0
    %2069 = vmatprep.subr.mxu0 0.0
    %2070 = vmatpush1.msra.mxu0 0.0
    %2071 = vmatprep.subr.mxu0 0.0
    %2072 = vmatpush1.msra.mxu0 0.0
    %2073 = vmatprep.subr.mxu0 0.0
    %2074 = vmatpush1.msra.mxu0 0.0
    %2075 = vmatprep.subr.mxu0 0.0
    %2076 = vmatpush1.msra.mxu0 0.0
    %2077 = vmatprep.subr.mxu0 0.0
    %2078 = vmatpush1.msra.mxu0 0.0
    %2079 = vmatprep.subr.mxu0 0.0
    %2080 = vmatpush1.msra.mxu0 0.0
    %2081 = vmatprep.subr.mxu0 0.0
    %2082 = vmatpush1.msra.mxu0 0.0
    %2083 = vmatprep.subr.mxu0 0.0
    %2084 = vmatpush1.msra.mxu0 0.0
    %2085 = vmatprep.subr.mxu0 0.0
    %2086 = vmatpush1.msra.mxu0 0.0
    %2087 = vmatprep.subr.mxu0 0.0
    %2088 = vmatpush1.msra.mxu0 0.0
    %2089 = vmatprep.subr.mxu0 0.0
    %2090 = vmatpush1.msra.mxu0 0.0
    %2091 = vmatprep.subr.mxu0 0.0
    %2092 = vmatpush1.msra.mxu0 0.0
    %2093 = vmatprep.subr.mxu0 0.0
    %2094 = vmatpush1.msra.mxu0 0.0
    %2095 = vmatprep.subr.mxu0 0.0
    %2096 = vmatpush1.msra.mxu0 0.0
    %2097 = vmatprep.subr.mxu0 0.0
    %2098 = vmatpush1.msra.mxu0 0.0
    %2099 = vmatprep.subr.mxu0 0.0
    %2100 = vmatpush1.msra.mxu0 0.0
    %2101 = vmatprep.subr.mxu0 0.0
    %2102 = vmatpush1.msra.mxu0 0.0
    %2103 = vmatprep.subr.mxu0 0.0
    %2104 = vmatpush1.msra.mxu0 0.0
    %2105 = vmatprep.subr.mxu0 0.0
    %2106 = vmatpush1.msra.mxu0 0.0
    %2107 = vmatprep.subr.mxu0 0.0
    %2108 = vmatpush1.msra.mxu0 0.0
    %2109 = vmatprep.subr.mxu0 0.0
    %2110 = vmatpush1.msra.mxu0 0.0
    %2111 = vmatprep.subr.mxu0 0.0
    %2112 = vmatpush1.msra.mxu0 0.0
    %2113 = vmatprep.subr.mxu0 0.0
    %2114 = vmatpush1.msra.mxu0 0.0
    %2115 = vmatprep.mubr.f32.mxu0 0.0
    %2116 = vmatmul.mubr.f32.gmra.mrb[0].mxu0 %v2049
    %v2117 = vpop.f32.mrb[0].mxu0
    %v2118 = vadd.f32 0.0, %v2117
    %v2119 = vpop.f32.mrb[0].mxu0
    %2120 = vdwg.mxu0
    %v2122 = vsel %vm657, %v1584, 0
    %2124 = vmatprep.subr.mxu0 0.0
    %2125 = vmatpush1.msra.mxu0 %v1969
    %2126 = vmatprep.subr.mxu0 0.0
    %2127 = vmatpush1.msra.mxu0 0.0
    %2128 = vmatprep.subr.mxu0 0.0
    %2129 = vmatpush1.msra.mxu0 0.0
    %2130 = vmatprep.subr.mxu0 0.0
    %2131 = vmatpush1.msra.mxu0 0.0
    %2132 = vmatprep.subr.mxu0 0.0
    %2133 = vmatpush1.msra.mxu0 0.0
    %2134 = vmatprep.subr.mxu0 0.0
    %2135 = vmatpush1.msra.mxu0 0.0
    %2136 = vmatprep.subr.mxu0 0.0
    %2137 = vmatpush1.msra.mxu0 0.0
    %2138 = vmatprep.subr.mxu0 0.0
    %2139 = vmatpush1.msra.mxu0 0.0
    %2140 = vmatprep.subr.mxu0 0.0
    %2141 = vmatpush1.msra.mxu0 0.0
    %2142 = vmatprep.subr.mxu0 0.0
    %2143 = vmatpush1.msra.mxu0 0.0
    %2144 = vmatprep.subr.mxu0 0.0
    %2145 = vmatpush1.msra.mxu0 0.0
    %2146 = vmatprep.subr.mxu0 0.0
    %2147 = vmatpush1.msra.mxu0 0.0
    %2148 = vmatprep.subr.mxu0 0.0
    %2149 = vmatpush1.msra.mxu0 0.0
    %2150 = vmatprep.subr.mxu0 0.0
    %2151 = vmatpush1.msra.mxu0 0.0
    %2152 = vmatprep.subr.mxu0 0.0
    %2153 = vmatpush1.msra.mxu0 0.0
    %2154 = vmatprep.subr.mxu0 0.0
    %2155 = vmatpush1.msra.mxu0 0.0
    %2156 = vmatprep.subr.mxu0 0.0
    %2157 = vmatpush1.msra.mxu0 0.0
    %2158 = vmatprep.subr.mxu0 0.0
    %2159 = vmatpush1.msra.mxu0 0.0
    %2160 = vmatprep.subr.mxu0 0.0
    %2161 = vmatpush1.msra.mxu0 0.0
    %2162 = vmatprep.subr.mxu0 0.0
    %2163 = vmatpush1.msra.mxu0 0.0
    %2164 = vmatprep.subr.mxu0 0.0
    %2165 = vmatpush1.msra.mxu0 0.0
    %2166 = vmatprep.subr.mxu0 0.0
    %2167 = vmatpush1.msra.mxu0 0.0
    %2168 = vmatprep.subr.mxu0 0.0
    %2169 = vmatpush1.msra.mxu0 0.0
    %2170 = vmatprep.subr.mxu0 0.0
    %2171 = vmatpush1.msra.mxu0 0.0
    %2172 = vmatprep.subr.mxu0 0.0
    %2173 = vmatpush1.msra.mxu0 0.0
    %2174 = vmatprep.subr.mxu0 0.0
    %2175 = vmatpush1.msra.mxu0 0.0
    %2176 = vmatprep.subr.mxu0 0.0
    %2177 = vmatpush1.msra.mxu0 0.0
    %2178 = vmatprep.subr.mxu0 0.0
    %2179 = vmatpush1.msra.mxu0 0.0
    %2180 = vmatprep.subr.mxu0 0.0
    %2181 = vmatpush1.msra.mxu0 0.0
    %2182 = vmatprep.subr.mxu0 0.0
    %2183 = vmatpush1.msra.mxu0 0.0
    %2184 = vmatprep.subr.mxu0 0.0
    %2185 = vmatpush1.msra.mxu0 0.0
    %2186 = vmatprep.subr.mxu0 0.0
    %2187 = vmatpush1.msra.mxu0 0.0
    %2188 = vmatprep.mubr.f32.mxu0 0.0
    %2189 = vmatmul.mubr.f32.gmra.mrb[0].mxu0 %v2122
    %v2190 = vpop.f32.mrb[0].mxu0
    %v2191 = vadd.f32 0.0, %v2190
    %v2192 = vpop.f32.mrb[0].mxu0
    %2193 = vdwg.mxu0
    %v2195 = vsel %vm657, %v1660, 0
    %2197 = vmatprep.subr.mxu0 0.0
    %2198 = vmatpush1.msra.mxu0 %v1970
    %2199 = vmatprep.subr.mxu0 0.0
    %2200 = vmatpush1.msra.mxu0 0.0
    %2201 = vmatprep.subr.mxu0 0.0
    %2202 = vmatpush1.msra.mxu0 0.0
    %2203 = vmatprep.subr.mxu0 0.0
    %2204 = vmatpush1.msra.mxu0 0.0
    %2205 = vmatprep.subr.mxu0 0.0
    %2206 = vmatpush1.msra.mxu0 0.0
    %2207 = vmatprep.subr.mxu0 0.0
    %2208 = vmatpush1.msra.mxu0 0.0
    %2209 = vmatprep.subr.mxu0 0.0
    %2210 = vmatpush1.msra.mxu0 0.0
    %2211 = vmatprep.subr.mxu0 0.0
    %2212 = vmatpush1.msra.mxu0 0.0
    %2213 = vmatprep.subr.mxu0 0.0
    %2214 = vmatpush1.msra.mxu0 0.0
    %2215 = vmatprep.subr.mxu0 0.0
    %2216 = vmatpush1.msra.mxu0 0.0
    %2217 = vmatprep.subr.mxu0 0.0
    %2218 = vmatpush1.msra.mxu0 0.0
    %2219 = vmatprep.subr.mxu0 0.0
    %2220 = vmatpush1.msra.mxu0 0.0
    %2221 = vmatprep.subr.mxu0 0.0
    %2222 = vmatpush1.msra.mxu0 0.0
    %2223 = vmatprep.subr.mxu0 0.0
    %2224 = vmatpush1.msra.mxu0 0.0
    %2225 = vmatprep.subr.mxu0 0.0
    %2226 = vmatpush1.msra.mxu0 0.0
    %2227 = vmatprep.subr.mxu0 0.0
    %2228 = vmatpush1.msra.mxu0 0.0
    %2229 = vmatprep.subr.mxu0 0.0
    %2230 = vmatpush1.msra.mxu0 0.0
    %2231 = vmatprep.subr.mxu0 0.0
    %2232 = vmatpush1.msra.mxu0 0.0
    %2233 = vmatprep.subr.mxu0 0.0
    %2234 = vmatpush1.msra.mxu0 0.0
    %2235 = vmatprep.subr.mxu0 0.0
    %2236 = vmatpush1.msra.mxu0 0.0
    %2237 = vmatprep.subr.mxu0 0.0
    %2238 = vmatpush1.msra.mxu0 0.0
    %2239 = vmatprep.subr.mxu0 0.0
    %2240 = vmatpush1.msra.mxu0 0.0
    %2241 = vmatprep.subr.mxu0 0.0
    %2242 = vmatpush1.msra.mxu0 0.0
    %2243 = vmatprep.subr.mxu0 0.0
    %2244 = vmatpush1.msra.mxu0 0.0
    %2245 = vmatprep.subr.mxu0 0.0
    %2246 = vmatpush1.msra.mxu0 0.0
    %2247 = vmatprep.subr.mxu0 0.0
    %2248 = vmatpush1.msra.mxu0 0.0
    %2249 = vmatprep.subr.mxu0 0.0
    %2250 = vmatpush1.msra.mxu0 0.0
    %2251 = vmatprep.subr.mxu0 0.0
    %2252 = vmatpush1.msra.mxu0 0.0
    %2253 = vmatprep.subr.mxu0 0.0
    %2254 = vmatpush1.msra.mxu0 0.0
    %2255 = vmatprep.subr.mxu0 0.0
    %2256 = vmatpush1.msra.mxu0 0.0
    %2257 = vmatprep.subr.mxu0 0.0
    %2258 = vmatpush1.msra.mxu0 0.0
    %2259 = vmatprep.subr.mxu0 0.0
    %2260 = vmatpush1.msra.mxu0 0.0
    %2261 = vmatprep.mubr.f32.mxu0 0.0
    %2262 = vmatmul.mubr.f32.gmra.mrb[0].mxu0 %v2195
    %v2263 = vpop.f32.mrb[0].mxu0
    %v2264 = vadd.f32 0.0, %v2263
    %v2265 = vpop.f32.mrb[0].mxu0
    %2266 = vdwg.mxu0
    %v2268 = vsel %vm657, %v1736, 0
    %2270 = vmatprep.subr.mxu0 0.0
    %2271 = vmatpush1.msra.mxu0 %v1971
    %2272 = vmatprep.subr.mxu0 0.0
    %2273 = vmatpush1.msra.mxu0 0.0
    %2274 = vmatprep.subr.mxu0 0.0
    %2275 = vmatpush1.msra.mxu0 0.0
    %2276 = vmatprep.subr.mxu0 0.0
    %2277 = vmatpush1.msra.mxu0 0.0
    %2278 = vmatprep.subr.mxu0 0.0
    %2279 = vmatpush1.msra.mxu0 0.0
    %2280 = vmatprep.subr.mxu0 0.0
    %2281 = vmatpush1.msra.mxu0 0.0
    %2282 = vmatprep.subr.mxu0 0.0
    %2283 = vmatpush1.msra.mxu0 0.0
    %2284 = vmatprep.subr.mxu0 0.0
    %2285 = vmatpush1.msra.mxu0 0.0
    %2286 = vmatprep.subr.mxu0 0.0
    %2287 = vmatpush1.msra.mxu0 0.0
    %2288 = vmatprep.subr.mxu0 0.0
    %2289 = vmatpush1.msra.mxu0 0.0
    %2290 = vmatprep.subr.mxu0 0.0
    %2291 = vmatpush1.msra.mxu0 0.0
    %2292 = vmatprep.subr.mxu0 0.0
    %2293 = vmatpush1.msra.mxu0 0.0
    %2294 = vmatprep.subr.mxu0 0.0
    %2295 = vmatpush1.msra.mxu0 0.0
    %2296 = vmatprep.subr.mxu0 0.0
    %2297 = vmatpush1.msra.mxu0 0.0
    %2298 = vmatprep.subr.mxu0 0.0
    %2299 = vmatpush1.msra.mxu0 0.0
    %2300 = vmatprep.subr.mxu0 0.0
    %2301 = vmatpush1.msra.mxu0 0.0
    %2302 = vmatprep.subr.mxu0 0.0
    %2303 = vmatpush1.msra.mxu0 0.0
    %2304 = vmatprep.subr.mxu0 0.0
    %2305 = vmatpush1.msra.mxu0 0.0
    %2306 = vmatprep.subr.mxu0 0.0
    %2307 = vmatpush1.msra.mxu0 0.0
    %2308 = vmatprep.subr.mxu0 0.0
    %2309 = vmatpush1.msra.mxu0 0.0
    %2310 = vmatprep.subr.mxu0 0.0
    %2311 = vmatpush1.msra.mxu0 0.0
    %2312 = vmatprep.subr.mxu0 0.0
    %2313 = vmatpush1.msra.mxu0 0.0
    %2314 = vmatprep.subr.mxu0 0.0
    %2315 = vmatpush1.msra.mxu0 0.0
    %2316 = vmatprep.subr.mxu0 0.0
    %2317 = vmatpush1.msra.mxu0 0.0
    %2318 = vmatprep.subr.mxu0 0.0
    %2319 = vmatpush1.msra.mxu0 0.0
    %2320 = vmatprep.subr.mxu0 0.0
    %2321 = vmatpush1.msra.mxu0 0.0
    %2322 = vmatprep.subr.mxu0 0.0
    %2323 = vmatpush1.msra.mxu0 0.0
    %2324 = vmatprep.subr.mxu0 0.0
    %2325 = vmatpush1.msra.mxu0 0.0
    %2326 = vmatprep.subr.mxu0 0.0
    %2327 = vmatpush1.msra.mxu0 0.0
    %2328 = vmatprep.subr.mxu0 0.0
    %2329 = vmatpush1.msra.mxu0 0.0
    %2330 = vmatprep.subr.mxu0 0.0
    %2331 = vmatpush1.msra.mxu0 0.0
    %2332 = vmatprep.subr.mxu0 0.0
    %2333 = vmatpush1.msra.mxu0 0.0
    %2334 = vmatprep.mubr.f32.mxu0 0.0
    %2335 = vmatmul.mubr.f32.gmra.mrb[0].mxu0 %v2268
    %v2336 = vpop.f32.mrb[0].mxu0
    %v2337 = vadd.f32 0.0, %v2336
    %v2338 = vpop.f32.mrb[0].mxu0
    %2339 = vdwg.mxu0
    %v2341 = vsel %vm657, %v1812, 0
    %2343 = vmatprep.subr.mxu0 0.0
    %2344 = vmatpush1.msra.mxu0 %v1972
    %2345 = vmatprep.subr.mxu0 0.0
    %2346 = vmatpush1.msra.mxu0 0.0
    %2347 = vmatprep.subr.mxu0 0.0
    %2348 = vmatpush1.msra.mxu0 0.0
    %2349 = vmatprep.subr.mxu0 0.0
    %2350 = vmatpush1.msra.mxu0 0.0
    %2351 = vmatprep.subr.mxu0 0.0
    %2352 = vmatpush1.msra.mxu0 0.0
    %2353 = vmatprep.subr.mxu0 0.0
    %2354 = vmatpush1.msra.mxu0 0.0
    %2355 = vmatprep.subr.mxu0 0.0
    %2356 = vmatpush1.msra.mxu0 0.0
    %2357 = vmatprep.subr.mxu0 0.0
    %2358 = vmatpush1.msra.mxu0 0.0
    %2359 = vmatprep.subr.mxu0 0.0
    %2360 = vmatpush1.msra.mxu0 0.0
    %2361 = vmatprep.subr.mxu0 0.0
    %2362 = vmatpush1.msra.mxu0 0.0
    %2363 = vmatprep.subr.mxu0 0.0
    %2364 = vmatpush1.msra.mxu0 0.0
    %2365 = vmatprep.subr.mxu0 0.0
    %2366 = vmatpush1.msra.mxu0 0.0
    %2367 = vmatprep.subr.mxu0 0.0
    %2368 = vmatpush1.msra.mxu0 0.0
    %2369 = vmatprep.subr.mxu0 0.0
    %2370 = vmatpush1.msra.mxu0 0.0
    %2371 = vmatprep.subr.mxu0 0.0
    %2372 = vmatpush1.msra.mxu0 0.0
    %2373 = vmatprep.subr.mxu0 0.0
    %2374 = vmatpush1.msra.mxu0 0.0
    %2375 = vmatprep.subr.mxu0 0.0
    %2376 = vmatpush1.msra.mxu0 0.0
    %2377 = vmatprep.subr.mxu0 0.0
    %2378 = vmatpush1.msra.mxu0 0.0
    %2379 = vmatprep.subr.mxu0 0.0
    %2380 = vmatpush1.msra.mxu0 0.0
    %2381 = vmatprep.subr.mxu0 0.0
    %2382 = vmatpush1.msra.mxu0 0.0
    %2383 = vmatprep.subr.mxu0 0.0
    %2384 = vmatpush1.msra.mxu0 0.0
    %2385 = vmatprep.subr.mxu0 0.0
    %2386 = vmatpush1.msra.mxu0 0.0
    %2387 = vmatprep.subr.mxu0 0.0
    %2388 = vmatpush1.msra.mxu0 0.0
    %2389 = vmatprep.subr.mxu0 0.0
    %2390 = vmatpush1.msra.mxu0 0.0
    %2391 = vmatprep.subr.mxu0 0.0
    %2392 = vmatpush1.msra.mxu0 0.0
    %2393 = vmatprep.subr.mxu0 0.0
    %2394 = vmatpush1.msra.mxu0 0.0
    %2395 = vmatprep.subr.mxu0 0.0
    %2396 = vmatpush1.msra.mxu0 0.0
    %2397 = vmatprep.subr.mxu0 0.0
    %2398 = vmatpush1.msra.mxu0 0.0
    %2399 = vmatprep.subr.mxu0 0.0
    %2400 = vmatpush1.msra.mxu0 0.0
    %2401 = vmatprep.subr.mxu0 0.0
    %2402 = vmatpush1.msra.mxu0 0.0
    %2403 = vmatprep.subr.mxu0 0.0
    %2404 = vmatpush1.msra.mxu0 0.0
    %2405 = vmatprep.subr.mxu0 0.0
    %2406 = vmatpush1.msra.mxu0 0.0
    %2407 = vmatprep.mubr.f32.mxu0 0.0
    %2408 = vmatmul.mubr.f32.gmra.mrb[0].mxu0 %v2341
    %v2409 = vpop.f32.mrb[0].mxu0
    %v2410 = vadd.f32 0.0, %v2409
    %v2411 = vpop.f32.mrb[0].mxu0
    %2412 = vdwg.mxu0
    %v2414 = vsel %vm657, %v1888, 0
    %2416 = vmatprep.subr.mxu0 0.0
    %2417 = vmatpush1.msra.mxu0 %v1973
    %2418 = vmatprep.subr.mxu0 0.0
    %2419 = vmatpush1.msra.mxu0 0.0
    %2420 = vmatprep.subr.mxu0 0.0
    %2421 = vmatpush1.msra.mxu0 0.0
    %2422 = vmatprep.subr.mxu0 0.0
    %2423 = vmatpush1.msra.mxu0 0.0
    %2424 = vmatprep.subr.mxu0 0.0
    %2425 = vmatpush1.msra.mxu0 0.0
    %2426 = vmatprep.subr.mxu0 0.0
    %2427 = vmatpush1.msra.mxu0 0.0
    %2428 = vmatprep.subr.mxu0 0.0
    %2429 = vmatpush1.msra.mxu0 0.0
    %2430 = vmatprep.subr.mxu0 0.0
    %2431 = vmatpush1.msra.mxu0 0.0
    %2432 = vmatprep.subr.mxu0 0.0
    %2433 = vmatpush1.msra.mxu0 0.0
    %2434 = vmatprep.subr.mxu0 0.0
    %2435 = vmatpush1.msra.mxu0 0.0
    %2436 = vmatprep.subr.mxu0 0.0
    %2437 = vmatpush1.msra.mxu0 0.0
    %2438 = vmatprep.subr.mxu0 0.0
    %2439 = vmatpush1.msra.mxu0 0.0
    %2440 = vmatprep.subr.mxu0 0.0
    %2441 = vmatpush1.msra.mxu0 0.0
    %2442 = vmatprep.subr.mxu0 0.0
    %2443 = vmatpush1.msra.mxu0 0.0
    %2444 = vmatprep.subr.mxu0 0.0
    %2445 = vmatpush1.msra.mxu0 0.0
    %2446 = vmatprep.subr.mxu0 0.0
    %2447 = vmatpush1.msra.mxu0 0.0
    %2448 = vmatprep.subr.mxu0 0.0
    %2449 = vmatpush1.msra.mxu0 0.0
    %2450 = vmatprep.subr.mxu0 0.0
    %2451 = vmatpush1.msra.mxu0 0.0
    %2452 = vmatprep.subr.mxu0 0.0
    %2453 = vmatpush1.msra.mxu0 0.0
    %2454 = vmatprep.subr.mxu0 0.0
    %2455 = vmatpush1.msra.mxu0 0.0
    %2456 = vmatprep.subr.mxu0 0.0
    %2457 = vmatpush1.msra.mxu0 0.0
    %2458 = vmatprep.subr.mxu0 0.0
    %2459 = vmatpush1.msra.mxu0 0.0
    %2460 = vmatprep.subr.mxu0 0.0
    %2461 = vmatpush1.msra.mxu0 0.0
    %2462 = vmatprep.subr.mxu0 0.0
    %2463 = vmatpush1.msra.mxu0 0.0
    %2464 = vmatprep.subr.mxu0 0.0
    %2465 = vmatpush1.msra.mxu0 0.0
    %2466 = vmatprep.subr.mxu0 0.0
    %2467 = vmatpush1.msra.mxu0 0.0
    %2468 = vmatprep.subr.mxu0 0.0
    %2469 = vmatpush1.msra.mxu0 0.0
    %2470 = vmatprep.subr.mxu0 0.0
    %2471 = vmatpush1.msra.mxu0 0.0
    %2472 = vmatprep.subr.mxu0 0.0
    %2473 = vmatpush1.msra.mxu0 0.0
    %2474 = vmatprep.subr.mxu0 0.0
    %2475 = vmatpush1.msra.mxu0 0.0
    %2476 = vmatprep.subr.mxu0 0.0
    %2477 = vmatpush1.msra.mxu0 0.0
    %2478 = vmatprep.subr.mxu0 0.0
    %2479 = vmatpush1.msra.mxu0 0.0
    %2480 = vmatprep.mubr.f32.mxu0 0.0
    %2481 = vmatmul.mubr.f32.gmra.mrb[0].mxu0 %v2414
    %v2482 = vpop.f32.mrb[0].mxu0
    %v2483 = vadd.f32 0.0, %v2482
    %v2484 = vpop.f32.mrb[0].mxu0
    %2485 = vdwg.mxu0
    %v2487 = vsel %vm657, %v1964, 0
    %2489 = vmatprep.subr.mxu0 0.0
    %2490 = vmatpush1.msra.mxu0 %v1974
    %2491 = vmatprep.subr.mxu0 0.0
    %2492 = vmatpush1.msra.mxu0 0.0
    %2493 = vmatprep.subr.mxu0 0.0
    %2494 = vmatpush1.msra.mxu0 0.0
    %2495 = vmatprep.subr.mxu0 0.0
    %2496 = vmatpush1.msra.mxu0 0.0
    %2497 = vmatprep.subr.mxu0 0.0
    %2498 = vmatpush1.msra.mxu0 0.0
    %2499 = vmatprep.subr.mxu0 0.0
    %2500 = vmatpush1.msra.mxu0 0.0
    %2501 = vmatprep.subr.mxu0 0.0
    %2502 = vmatpush1.msra.mxu0 0.0
    %2503 = vmatprep.subr.mxu0 0.0
    %2504 = vmatpush1.msra.mxu0 0.0
    %2505 = vmatprep.subr.mxu0 0.0
    %2506 = vmatpush1.msra.mxu0 0.0
    %2507 = vmatprep.subr.mxu0 0.0
    %2508 = vmatpush1.msra.mxu0 0.0
    %2509 = vmatprep.subr.mxu0 0.0
    %2510 = vmatpush1.msra.mxu0 0.0
    %2511 = vmatprep.subr.mxu0 0.0
    %2512 = vmatpush1.msra.mxu0 0.0
    %2513 = vmatprep.subr.mxu0 0.0
    %2514 = vmatpush1.msra.mxu0 0.0
    %2515 = vmatprep.subr.mxu0 0.0
    %2516 = vmatpush1.msra.mxu0 0.0
    %2517 = vmatprep.subr.mxu0 0.0
    %2518 = vmatpush1.msra.mxu0 0.0
    %2519 = vmatprep.subr.mxu0 0.0
    %2520 = vmatpush1.msra.mxu0 0.0
    %2521 = vmatprep.subr.mxu0 0.0
    %2522 = vmatpush1.msra.mxu0 0.0
    %2523 = vmatprep.subr.mxu0 0.0
    %2524 = vmatpush1.msra.mxu0 0.0
    %2525 = vmatprep.subr.mxu0 0.0
    %2526 = vmatpush1.msra.mxu0 0.0
    %2527 = vmatprep.subr.mxu0 0.0
    %2528 = vmatpush1.msra.mxu0 0.0
    %2529 = vmatprep.subr.mxu0 0.0
    %2530 = vmatpush1.msra.mxu0 0.0
    %2531 = vmatprep.subr.mxu0 0.0
    %2532 = vmatpush1.msra.mxu0 0.0
    %2533 = vmatprep.subr.mxu0 0.0
    %2534 = vmatpush1.msra.mxu0 0.0
    %2535 = vmatprep.subr.mxu0 0.0
    %2536 = vmatpush1.msra.mxu0 0.0
    %2537 = vmatprep.subr.mxu0 0.0
    %2538 = vmatpush1.msra.mxu0 0.0
    %2539 = vmatprep.subr.mxu0 0.0
    %2540 = vmatpush1.msra.mxu0 0.0
    %2541 = vmatprep.subr.mxu0 0.0
    %2542 = vmatpush1.msra.mxu0 0.0
    %2543 = vmatprep.subr.mxu0 0.0
    %2544 = vmatpush1.msra.mxu0 0.0
    %2545 = vmatprep.subr.mxu0 0.0
    %2546 = vmatpush1.msra.mxu0 0.0
    %2547 = vmatprep.subr.mxu0 0.0
    %2548 = vmatpush1.msra.mxu0 0.0
    %2549 = vmatprep.subr.mxu0 0.0
    %2550 = vmatpush1.msra.mxu0 0.0
    %2551 = vmatprep.subr.mxu0 0.0
    %2552 = vmatpush1.msra.mxu0 0.0
    %2553 = vmatprep.mubr.f32.mxu0 0.0
    %2554 = vmatmul.mubr.f32.gmra.mrb[0].mxu0 %v2487
    %v2555 = vpop.f32.mrb[0].mxu0
    %v2556 = vadd.f32 0.0, %v2555
    %v2557 = vpop.f32.mrb[0].mxu0
    %2558 = vdwg.mxu0
    %v2559 = vsel %vm31, %v2045, 0.0
    %v2560 = vsel %vm31, %v2118, 0.0
    %v2561 = vadd.f32 %v2559, %v2560
    %v2562 = vsel %vm31, %v2191, 0.0
    %v2563 = vadd.f32 %v2561, %v2562
    %v2564 = vsel %vm31, %v2264, 0.0
    %v2565 = vadd.f32 %v2563, %v2564
    %v2566 = vsel %vm31, %v2337, 0.0
    %v2567 = vsel %vm31, %v2410, 0.0
    %v2568 = vadd.f32 %v2566, %v2567
    %v2569 = vsel %vm31, %v2483, 0.0
    %v2570 = vadd.f32 %v2568, %v2569
    %v2571 = vsel %vm31, %v2556, 0.0
    %v2572 = vadd.f32 %v2570, %v2571
    %v2573 = vadd.f32 %v27, %v2565
    %v2574 = vadd.f32 %v28, %v2572
    %v2575 = vmul.f32 %v2573, %v2573
    %v2576 = vmul.f32 %v2574, %v2574
    %v2577 = vsel %vm31, %v2575, 0.0
    %2578 = vadd.xlane.f32.xlu0 %v2577
    %v2579 = vpop.xlane.xlu0 %2578
    %v2580 = vsel %vm31, %v2576, 0.0
    %2581 = vadd.xlane.f32.xlu0 %v2580
    %v2582 = vpop.xlane.xlu0 %2581
    %v2583 = vmul.f32 %v2579, %v38
    %v2584 = vmul.f32 %v2582, %v38
    %v2585 = vadd.f32 %v2583, 1e-06
    %v2586 = vadd.f32 %v2584, 1e-06
    %v2587 = vrsqrt.pop %v2585
    %v2588 = vrsqrt.pop %v2586
    %v2589 = vmul.f32 %v2573, %v2587
    %v2590 = vmul.f32 %v2574, %v2588
    %v2591 = vld [vmem:[%s6] sm:$0x1]
    %v2593 = vlaneseq
    %v2594 = vshrl.u32 %v2593, 7
    %v2595 = vsub.s32 0, %v2594
    %v2596 = vrot.slane %v2591, %v2595
    %v2598 = vmul.f32 %v2589, %v2596
    %v2599 = vmul.f32 %v2590, %v2596
    %v2600 = vld [vmem:[%s3] sm:$0xff]
    %v2601 = vld [vmem:[%s3 + $0x8] sm:$0xff]
    %v2602 = vld [vmem:[%s3 + $0x10] sm:$0xff]
    %v2603 = vld [vmem:[%s3 + $0x18] sm:$0xff]
    %v2605 = vsel %vm31, %v2598, 0
    %v2608 = vsel %vm31, %v2599, 0
    %2610 = vmatprep.subr.mxu0 0.0
    %2611 = vmatpush1.msra.mxu0 %v2600
    %2612 = vmatprep.subr.mxu0 0.0
    %2613 = vmatpush1.msra.mxu0 %v2601
    %2614 = vmatprep.subr.mxu0 0.0
    %2615 = vmatpush1.msra.mxu0 %v2602
    %2616 = vmatprep.subr.mxu0 0.0
    %2617 = vmatpush1.msra.mxu0 %v2603
    %2618 = vmatprep.subr.mxu0 0.0
    %2619 = vmatpush1.msra.mxu0 0.0
    %2620 = vmatprep.subr.mxu0 0.0
    %2621 = vmatpush1.msra.mxu0 0.0
    %2622 = vmatprep.subr.mxu0 0.0
    %2623 = vmatpush1.msra.mxu0 0.0
    %2624 = vmatprep.subr.mxu0 0.0
    %2625 = vmatpush1.msra.mxu0 0.0
    %2626 = vmatprep.subr.mxu0 0.0
    %2627 = vmatpush1.msra.mxu0 0.0
    %2628 = vmatprep.subr.mxu0 0.0
    %2629 = vmatpush1.msra.mxu0 0.0
    %2630 = vmatprep.subr.mxu0 0.0
    %2631 = vmatpush1.msra.mxu0 0.0
    %2632 = vmatprep.subr.mxu0 0.0
    %2633 = vmatpush1.msra.mxu0 0.0
    %2634 = vmatprep.subr.mxu0 0.0
    %2635 = vmatpush1.msra.mxu0 0.0
    %2636 = vmatprep.subr.mxu0 0.0
    %2637 = vmatpush1.msra.mxu0 0.0
    %2638 = vmatprep.subr.mxu0 0.0
    %2639 = vmatpush1.msra.mxu0 0.0
    %2640 = vmatprep.subr.mxu0 0.0
    %2641 = vmatpush1.msra.mxu0 0.0
    %2642 = vmatprep.subr.mxu0 0.0
    %2643 = vmatpush1.msra.mxu0 0.0
    %2644 = vmatprep.subr.mxu0 0.0
    %2645 = vmatpush1.msra.mxu0 0.0
    %2646 = vmatprep.subr.mxu0 0.0
    %2647 = vmatpush1.msra.mxu0 0.0
    %2648 = vmatprep.subr.mxu0 0.0
    %2649 = vmatpush1.msra.mxu0 0.0
    %2650 = vmatprep.subr.mxu0 0.0
    %2651 = vmatpush1.msra.mxu0 0.0
    %2652 = vmatprep.subr.mxu0 0.0
    %2653 = vmatpush1.msra.mxu0 0.0
    %2654 = vmatprep.subr.mxu0 0.0
    %2655 = vmatpush1.msra.mxu0 0.0
    %2656 = vmatprep.subr.mxu0 0.0
    %2657 = vmatpush1.msra.mxu0 0.0
    %2658 = vmatprep.subr.mxu0 0.0
    %2659 = vmatpush1.msra.mxu0 0.0
    %2660 = vmatprep.subr.mxu0 0.0
    %2661 = vmatpush1.msra.mxu0 0.0
    %2662 = vmatprep.subr.mxu0 0.0
    %2663 = vmatpush1.msra.mxu0 0.0
    %2664 = vmatprep.subr.mxu0 0.0
    %2665 = vmatpush1.msra.mxu0 0.0
    %2666 = vmatprep.subr.mxu0 0.0
    %2667 = vmatpush1.msra.mxu0 0.0
    %2668 = vmatprep.subr.mxu0 0.0
    %2669 = vmatpush1.msra.mxu0 0.0
    %2670 = vmatprep.subr.mxu0 0.0
    %2671 = vmatpush1.msra.mxu0 0.0
    %2672 = vmatprep.subr.mxu0 0.0
    %2673 = vmatpush1.msra.mxu0 0.0
    %2674 = vmatprep.mubr.f32.mxu0 0.0
    %2675 = vmatmul.mubr.f32.gmra.mrb[0].mxu0 %v2605
    %v2676 = vpop.f32.mrb[0].mxu0
    %v2677 = vadd.f32 0.0, %v2676
    %v2678 = vpop.f32.mrb[0].mxu0
    %2679 = vmatprep.mubr.f32.mxu0 0.0
    %2680 = vmatmul.mubr.f32.gmra.mrb[0].mxu0 %v2608
    %v2681 = vpop.f32.mrb[0].mxu0
    %v2682 = vadd.f32 0.0, %v2681
    %v2683 = vpop.f32.mrb[0].mxu0
    %2684 = vdwg.mxu0
    %v2685 = vxor.u32 %v2677, 2147483648
    %v2686 = vxor.u32 %v2682, 2147483648
    %v2687 = vmul.f32 %v2685, 1.442695
    %v2688 = vpow.pop %v2687
    %v2689 = vmul.f32 %v2686, 1.442695
    %v2690 = vpow.pop %v2689
    %v2691 = vadd.f32 %v2688, 1.0
    %v2692 = vadd.f32 %v2690, 1.0
    %v2693 = vrcp.pop %v2691
    %v2694 = vmul.f32 1.0, %v2693
    %v2695 = vrcp.pop %v2692
    %v2696 = vmul.f32 1.0, %v2695
    %v2697 = vmul.f32 %v2677, %v2694
    %v2698 = vmul.f32 %v2682, %v2696
    %v2699 = vld [vmem:[%s4] sm:$0xff]
    %v2700 = vld [vmem:[%s4 + $0x8] sm:$0xff]
    %v2701 = vld [vmem:[%s4 + $0x10] sm:$0xff]
    %v2702 = vld [vmem:[%s4 + $0x18] sm:$0xff]
    %v2703 = vld [vmem:[%s4 + $0x20] sm:$0xff]
    %v2704 = vld [vmem:[%s4 + $0x28] sm:$0xff]
    %v2705 = vld [vmem:[%s4 + $0x30] sm:$0xff]
    %v2706 = vld [vmem:[%s4 + $0x38] sm:$0xff]
    %v2707 = vld [vmem:[%s4 + $0x40] sm:$0xff]
    %v2708 = vld [vmem:[%s4 + $0x48] sm:$0xff]
    %v2709 = vld [vmem:[%s4 + $0x50] sm:$0xff]
    %v2710 = vld [vmem:[%s4 + $0x58] sm:$0xff]
    %v2711 = vld [vmem:[%s4 + $0x60] sm:$0xff]
    %v2712 = vld [vmem:[%s4 + $0x68] sm:$0xff]
    %v2713 = vld [vmem:[%s4 + $0x70] sm:$0xff]
    %v2714 = vld [vmem:[%s4 + $0x78] sm:$0xff]
    %2715 = vmatprep.subr.mxu0 0.0
    %2716 = vmatpush1.msra.mxu0 %v2699
    %2717 = vmatprep.subr.mxu0 0.0
    %2718 = vmatpush1.msra.mxu0 %v2700
    %2719 = vmatprep.subr.mxu0 0.0
    %2720 = vmatpush1.msra.mxu0 %v2701
    %2721 = vmatprep.subr.mxu0 0.0
    %2722 = vmatpush1.msra.mxu0 %v2702
    %2723 = vmatprep.subr.mxu0 0.0
    %2724 = vmatpush1.msra.mxu0 %v2703
    %2725 = vmatprep.subr.mxu0 0.0
    %2726 = vmatpush1.msra.mxu0 %v2704
    %2727 = vmatprep.subr.mxu0 0.0
    %2728 = vmatpush1.msra.mxu0 %v2705
    %2729 = vmatprep.subr.mxu0 0.0
    %2730 = vmatpush1.msra.mxu0 %v2706
    %2731 = vmatprep.subr.mxu0 0.0
    %2732 = vmatpush1.msra.mxu0 %v2707
    %2733 = vmatprep.subr.mxu0 0.0
    %2734 = vmatpush1.msra.mxu0 %v2708
    %2735 = vmatprep.subr.mxu0 0.0
    %2736 = vmatpush1.msra.mxu0 %v2709
    %2737 = vmatprep.subr.mxu0 0.0
    %2738 = vmatpush1.msra.mxu0 %v2710
    %2739 = vmatprep.subr.mxu0 0.0
    %2740 = vmatpush1.msra.mxu0 %v2711
    %2741 = vmatprep.subr.mxu0 0.0
    %2742 = vmatpush1.msra.mxu0 %v2712
    %2743 = vmatprep.subr.mxu0 0.0
    %2744 = vmatpush1.msra.mxu0 %v2713
    %2745 = vmatprep.subr.mxu0 0.0
    %2746 = vmatpush1.msra.mxu0 %v2714
    %2747 = vmatprep.subr.mxu0 0.0
    %2748 = vmatpush1.msra.mxu0 0.0
    %2749 = vmatprep.subr.mxu0 0.0
    %2750 = vmatpush1.msra.mxu0 0.0
    %2751 = vmatprep.subr.mxu0 0.0
    %2752 = vmatpush1.msra.mxu0 0.0
    %2753 = vmatprep.subr.mxu0 0.0
    %2754 = vmatpush1.msra.mxu0 0.0
    %2755 = vmatprep.subr.mxu0 0.0
    %2756 = vmatpush1.msra.mxu0 0.0
    %2757 = vmatprep.subr.mxu0 0.0
    %2758 = vmatpush1.msra.mxu0 0.0
    %2759 = vmatprep.subr.mxu0 0.0
    %2760 = vmatpush1.msra.mxu0 0.0
    %2761 = vmatprep.subr.mxu0 0.0
    %2762 = vmatpush1.msra.mxu0 0.0
    %2763 = vmatprep.subr.mxu0 0.0
    %2764 = vmatpush1.msra.mxu0 0.0
    %2765 = vmatprep.subr.mxu0 0.0
    %2766 = vmatpush1.msra.mxu0 0.0
    %2767 = vmatprep.subr.mxu0 0.0
    %2768 = vmatpush1.msra.mxu0 0.0
    %2769 = vmatprep.subr.mxu0 0.0
    %2770 = vmatpush1.msra.mxu0 0.0
    %2771 = vmatprep.subr.mxu0 0.0
    %2772 = vmatpush1.msra.mxu0 0.0
    %2773 = vmatprep.subr.mxu0 0.0
    %2774 = vmatpush1.msra.mxu0 0.0
    %2775 = vmatprep.subr.mxu0 0.0
    %2776 = vmatpush1.msra.mxu0 0.0
    %2777 = vmatprep.subr.mxu0 0.0
    %2778 = vmatpush1.msra.mxu0 0.0
    %2779 = vmatprep.mubr.f32.mxu0 0.0
    %2780 = vmatmul.mubr.f32.gmra.mrb[0].mxu0 %v2697
    %v2781 = vpop.f32.mrb[0].mxu0
    %v2782 = vadd.f32 0.0, %v2781
    %v2783 = vpop.f32.mrb[0].mxu0
    %2784 = vmatprep.mubr.f32.mxu0 0.0
    %2785 = vmatmul.mubr.f32.gmra.mrb[0].mxu0 %v2698
    %v2786 = vpop.f32.mrb[0].mxu0
    %v2787 = vadd.f32 0.0, %v2786
    %v2788 = vpop.f32.mrb[0].mxu0
    %2789 = vdwg.mxu0
    %v2790 = vadd.f32 %v2573, %v2782
    %v2791 = vadd.f32 %v2574, %v2787
    %2792 = vst.msk [vmem:[#allocation2] sm:$0xff] %vm31, %v2790
    %2793 = vst.msk [vmem:[#allocation2 + $0x8] sm:$0xff] %vm31, %v2791
    // Predicated region
    $region30: #{tpu_custom_call.1} parent=1 // pred_check
      _
    $region31: #{tpu_custom_call.1} parent=1 // pred_check_branch
      %2795 = sbr.rel (0) target = $region33
    $region32: #{tpu_custom_call.1} parent=1 // pred_region
      %s2797 = ssub.s32 256, 256
      %2798 = vsyncadd [#allocation3], %s2797
      %s2799 = sshll.u32 [#allocation2], 4
      %s2800 = int_to_ptr.vmem [resolvable:$true] %s2799
      %2805 = dma.vmem_to_hbm [thread:$0]  %s2800, 256, %s7, [#allocation3], 128, 128, 8
    $region33: #{tpu_custom_call.1} parent=1 // pred_fallthru
      _
    // Predicated region
    $region34: #{tpu_custom_call.1} parent=1 // pred_check
      _
    $region35: #{tpu_custom_call.1} parent=1 // pred_check_branch
      %2807 = sbr.rel (0) target = $region37
    $region36: #{tpu_custom_call.1} parent=1 // pred_region
      %2808 = dma.done [#allocation3], 256
    $region37: #{tpu_custom_call.1} parent=1 // pred_fallthru
      _
    %2809 = vsyncpa [#allocation3], 1

</llo_original>
